<compile_context>
chip_gen: v7x
topology: tpu7x:2x2x1
jax: 0.10.0
libtpu: 0.0.40
codegen_flags: <defaults>
</compile_context>

<pallas_src>
import functools
import math

import jax
import jax.numpy as jnp
from jax.experimental import pallas as pl
from jax.experimental.pallas import tpu as pltpu


# -----------------------------------------------------------------------------
# Pallas kernel: one full encoder layer for a slab of bt batch elements.
# -----------------------------------------------------------------------------
def encoder_layer_kernel(
    x_ref,      # (bt*L, D) f32   activations, batch-major rows
    bias_ref,   # (bt*H, 1, L) f32 additive attention bias (0 / -1e30)
    wqkv_ref,   # (D, 3D) bf16    fused QKV weight (pre-transposed)
    fcw_ref,    # (D, D)  bf16    attention out-proj weight (pre-transposed)
    fcb_ref,    # (1, D)  f32
    w1_ref,     # (D, F)  bf16    FFN linear1 weight (pre-transposed)
    b1_ref,     # (1, F)  f32
    w2_ref,     # (F, D)  bf16    FFN linear2 weight (pre-transposed)
    b2_ref,     # (1, D)  f32
    g1_ref,     # (1, D)  f32     LayerNorm1 gamma
    be1_ref,    # (1, D)  f32     LayerNorm1 beta
    g2_ref,     # (1, D)  f32     LayerNorm2 gamma
    be2_ref,    # (1, D)  f32     LayerNorm2 beta
    out_ref,    # (bt*L, D) f32
    *,
    num_heads,
    seq_len,
):
    f32, bf16 = jnp.float32, jnp.bfloat16
    M, D = x_ref.shape
    L = seq_len
    H = num_heads
    bt = M // L
    dh = D // H
    eps = 1e-5

    x = x_ref[...]                                              # (M, D) f32

    # ---- fused QKV projection: one (M,D)x(D,3D) bf16 matmul, f32 accum -----
    qkv = jnp.dot(x.astype(bf16), wqkv_ref[...],
                  preferred_element_type=f32)                   # (M, 3D)

    # ---- marshal (batch, head)-major operands: (n, L, dh), n = bt*H --------
    # (static slices + leading-axis stack only; the matmuls below are batched)
    def heads(base):
        tiles = [qkv[b * L:(b + 1) * L, base + h * dh: base + (h + 1) * dh]
                 for b in range(bt) for h in range(H)]
        return jnp.stack(tiles, axis=0).astype(bf16)            # (n, L, dh)

    q, k, v = heads(0), heads(D), heads(2 * D)

    # ---- batched scaled-dot-product attention with additive mask bias ------
    s = jnp.einsum("nqd,nkd->nqk", q, k,
                   preferred_element_type=f32) * (1.0 / math.sqrt(dh))
    s = s + bias_ref[...]                                       # (n,1,L) bcast
    s = s - jnp.max(s, axis=-1, keepdims=True)
    e = jnp.exp(s)
    p = e * pl.reciprocal(jnp.sum(e, axis=-1, keepdims=True), approx=True)
    o = jnp.einsum("nqk,nkd->nqd", p.astype(bf16), v,
                   preferred_element_type=f32)                  # (n, L, dh)

    # ---- back to row-major (M, D) -------------------------------------------
    attn = jnp.concatenate(
        [jnp.concatenate([o[b * H + h] for h in range(H)], axis=-1)
         for b in range(bt)],
        axis=0)                                                 # (M, D)

    # ---- attention output projection ----------------------------------------
    attn = jnp.dot(attn.astype(bf16), fcw_ref[...],
                   preferred_element_type=f32) + fcb_ref[0]

    # ---- residual + LayerNorm1 (f32) -----------------------------------------
    y = x + attn
    mu = jnp.mean(y, axis=-1, keepdims=True)
    var = jnp.mean((y - mu) ** 2, axis=-1, keepdims=True)
    y = (y - mu) * jax.lax.rsqrt(var + eps) * g1_ref[0] + be1_ref[0]

    # ---- feed-forward network ------------------------------------------------
    h1 = jnp.dot(y.astype(bf16), w1_ref[...],
                 preferred_element_type=f32) + b1_ref[0]
    h1 = jnp.maximum(h1, 0.0)                                   # ReLU
    f = jnp.dot(h1.astype(bf16), w2_ref[...],
                preferred_element_type=f32) + b2_ref[0]

    # ---- residual + LayerNorm2 (f32) -----------------------------------------
    z = y + f
    mu2 = jnp.mean(z, axis=-1, keepdims=True)
    var2 = jnp.mean((z - mu2) ** 2, axis=-1, keepdims=True)
    z = (z - mu2) * jax.lax.rsqrt(var2 + eps) * g2_ref[0] + be2_ref[0]

    out_ref[...] = z.astype(out_ref.dtype)


# -----------------------------------------------------------------------------
# Wrapper: (len, batch, d_model) in/out; grid over batch blocks.
# -----------------------------------------------------------------------------
def encoder_layer_pallas(src, padding_mask, params, *, num_heads, batch_block=None):
    L, B, D = src.shape
    F = params["w1"].shape[0]
    H = num_heads

    # Fold several batch elements into the matmul M dimension per grid step
    # (target ~128 rows per step; must divide B).  Raise at real model sizes;
    # lower it to give both v7x TensorCores their own grid steps when B is big.
    if batch_block is None:
        batch_block = max(1, min(B, 128 // max(L, 1)))
        while B % batch_block:
            batch_block -= 1
    bt = batch_block
    grid = (B // bt,)

    # Batch-major 2-D activation slab: rows ordered (batch, position) so each
    # grid step sees bt complete batch elements as contiguous, matmul-ready rows.
    x2d = jnp.transpose(src, (1, 0, 2)).reshape(B * L, D).astype(jnp.float32)

    # Additive attention bias expanded per (batch, head): (B*H, 1, L).
    bias = jnp.where(padding_mask, jnp.float32(-1e30), jnp.float32(0.0))
    bias = jnp.repeat(bias, H, axis=0)[:, None, :]

    bf16 = jnp.bfloat16
    wqkv_t = params["w_qkv"].T.astype(bf16)    # (D, 3D)
    fcw_t = params["fc_w"].T.astype(bf16)      # (D, D)
    w1_t = params["w1"].T.astype(bf16)         # (D, F)
    w2_t = params["w2"].T.astype(bf16)         # (F, D)

    def full(shape):
        nd = len(shape)
        return pl.BlockSpec(shape, lambda g, _nd=nd: (0,) * _nd)

    kernel = functools.partial(encoder_layer_kernel, num_heads=H, seq_len=L)

    out2d = pl.pallas_call(
        kernel,
        out_shape=jax.ShapeDtypeStruct((B * L, D), jnp.float32),
        grid_spec=pltpu.PrefetchScalarGridSpec(
            num_scalar_prefetch=0,
            grid=grid,
            in_specs=[
                pl.BlockSpec((bt * L, D), lambda g: (g, 0)),          # x
                pl.BlockSpec((bt * H, 1, L), lambda g: (g, 0, 0)),    # bias
                full((D, 3 * D)),                                     # w_qkv^T
                full((D, D)),                                         # fc_w^T
                full((1, D)),                                         # fc_b
                full((D, F)),                                         # w1^T
                full((1, F)),                                         # b1
                full((F, D)),                                         # w2^T
                full((1, D)),                                         # b2
                full((1, D)), full((1, D)), full((1, D)), full((1, D)),
            ],
            out_specs=pl.BlockSpec((bt * L, D), lambda g: (g, 0)),
        ),
        compiler_params=pltpu.CompilerParams(
            dimension_semantics=("parallel",),
        ),
    )(
        x2d, bias, wqkv_t, fcw_t, params["fc_b"],
        w1_t, params["b1"], w2_t, params["b2"],
        params["g1"], params["be1"], params["g2"], params["be2"],
    )
    return jnp.transpose(out2d.reshape(B, L, D), (1, 0, 2))   # back to (L, B, D)


# -----------------------------------------------------------------------------
# Pure-JAX f32 reference (mirrors the PyTorch forward exactly, eval mode).
# -----------------------------------------------------------------------------
def encoder_layer_ref(src, padding_mask, params, *, num_heads):
    L, B, D = src.shape
    dh = D // num_heads
    eps = 1e-5

    def layernorm(x, g, b):
        mu = jnp.mean(x, axis=-1, keepdims=True)
        var = jnp.mean((x - mu) ** 2, axis=-1, keepdims=True)
        return (x - mu) * jax.lax.rsqrt(var + eps) * g + b

    qkv = src @ params["w_qkv"].T                              # (L, B, 3D)
    q, k, v = jnp.split(qkv, 3, axis=-1)

    def heads(x):
        return x.reshape(L, B * num_heads, dh).transpose(1, 0, 2)   # (B*H, L, dh)

    q, k, v = heads(q), heads(k), heads(v)
    scores = jnp.einsum("nqd,nkd->nqk", q, k) / math.sqrt(dh)
    scores = scores.reshape(B, num_heads, L, L)
    scores = jnp.where(padding_mask[:, None, None, :], -jnp.inf, scores)
    p = jax.nn.softmax(scores, axis=-1).reshape(B * num_heads, L, L)
    attn = jnp.einsum("nqk,nkd->nqd", p, v)
    attn = attn.transpose(1, 0, 2).reshape(L, B, D)
    attn = attn @ params["fc_w"].T + params["fc_b"][0]

    y = layernorm(src + attn, params["g1"][0], params["be1"][0])
    f = jax.nn.relu(y @ params["w1"].T + params["b1"][0]) @ params["w2"].T + params["b2"][0]
    return layernorm(y + f, params["g2"][0], params["be2"][0])


# -----------------------------------------------------------------------------
# Main
# -----------------------------------------------------------------------------
if __name__ == "__main__":
    # Small shapes consistent with the module's forward.
    L, B, D, H, FF = 8, 2, 32, 4, 64

    key = jax.random.PRNGKey(0)
    keys = jax.random.split(key, 12)

    params = {
        "w_qkv": 0.1 * jax.random.normal(keys[0], (3 * D, D), jnp.float32),
        "fc_w":  0.1 * jax.random.normal(keys[1], (D, D), jnp.float32),
        "fc_b":  0.1 * jax.random.normal(keys[2], (1, D), jnp.float32),
        "w1":    0.1 * jax.random.normal(keys[3], (FF, D), jnp.float32),
        "b1":    0.1 * jax.random.normal(keys[4], (1, FF), jnp.float32),
        "w2":    0.1 * jax.random.normal(keys[5], (D, FF), jnp.float32),
        "b2":    0.1 * jax.random.normal(keys[6], (1, D), jnp.float32),
        "g1":    1.0 + 0.05 * jax.random.normal(keys[7], (1, D), jnp.float32),
        "be1":   0.05 * jax.random.normal(keys[8], (1, D), jnp.float32),
        "g2":    1.0 + 0.05 * jax.random.normal(keys[9], (1, D), jnp.float32),
        "be2":   0.05 * jax.random.normal(keys[10], (1, D), jnp.float32),
    }

    src = jax.random.normal(keys[11], (L, B, D), jnp.float32)
    # padding_mask: (batch, len_kv) boolean, True = padded position.
    padding_mask = jnp.zeros((B, L), jnp.bool_).at[1, L - 2:].set(True)

    out = encoder_layer_pallas(src, padding_mask, params, num_heads=H)
    out = jax.block_until_ready(out)

    ref = encoder_layer_ref(src, padding_mask, params, num_heads=H)
    assert out.shape == (L, B, D)
    err = jnp.max(jnp.abs(out - ref))
    # bf16 MXU operands (f32 accumulation) + approx reciprocal => loosened tol.
    assert jnp.allclose(out, ref, atol=2e-2, rtol=2e-2), f"max abs err = {err}"

    print("KERNEL_OK")
</pallas_src>

<mosaic_0001>
module attributes {stable_mosaic.version = 11 : i64} {
  func.func @encoder_layer_kernel(%arg0: i32, %arg1: memref<16x32xf32, #tpu.memory_space<vmem>>, %arg2: memref<8x1x8xf32, #tpu.memory_space<vmem>>, %arg3: memref<32x96xbf16, #tpu.memory_space<vmem>>, %arg4: memref<32x32xbf16, #tpu.memory_space<vmem>>, %arg5: memref<1x32xf32, #tpu.memory_space<vmem>>, %arg6: memref<32x64xbf16, #tpu.memory_space<vmem>>, %arg7: memref<1x64xf32, #tpu.memory_space<vmem>>, %arg8: memref<64x32xbf16, #tpu.memory_space<vmem>>, %arg9: memref<1x32xf32, #tpu.memory_space<vmem>>, %arg10: memref<1x32xf32, #tpu.memory_space<vmem>>, %arg11: memref<1x32xf32, #tpu.memory_space<vmem>>, %arg12: memref<1x32xf32, #tpu.memory_space<vmem>>, %arg13: memref<1x32xf32, #tpu.memory_space<vmem>>, %arg14: memref<16x32xf32, #tpu.memory_space<vmem>>) attributes {dimension_semantics = [#tpu.dimension_semantics<parallel>], iteration_bounds = array<i64: 1>, scalar_prefetch = 0 : i64, scratch_operands = 0 : i64, tpu.core_type = #tpu.core_type<tc>, window_params = [{transform_indices = @transform_0, window_bounds = array<i64: 16, 32>}, {transform_indices = @transform_1, window_bounds = array<i64: 8, 1, 8>}, {pipeline_mode = #tpu.pipeline_mode<synchronous>, transform_indices = @transform_2, window_bounds = array<i64: 32, 96>}, {pipeline_mode = #tpu.pipeline_mode<synchronous>, transform_indices = @transform_3, window_bounds = array<i64: 32, 32>}, {pipeline_mode = #tpu.pipeline_mode<synchronous>, transform_indices = @transform_4, window_bounds = array<i64: 1, 32>}, {pipeline_mode = #tpu.pipeline_mode<synchronous>, transform_indices = @transform_5, window_bounds = array<i64: 32, 64>}, {pipeline_mode = #tpu.pipeline_mode<synchronous>, transform_indices = @transform_6, window_bounds = array<i64: 1, 64>}, {pipeline_mode = #tpu.pipeline_mode<synchronous>, transform_indices = @transform_7, window_bounds = array<i64: 64, 32>}, {pipeline_mode = #tpu.pipeline_mode<synchronous>, transform_indices = @transform_8, window_bounds = array<i64: 1, 32>}, {pipeline_mode = #tpu.pipeline_mode<synchronous>, transform_indices = @transform_9, window_bounds = array<i64: 1, 32>}, {pipeline_mode = #tpu.pipeline_mode<synchronous>, transform_indices = @transform_10, window_bounds = array<i64: 1, 32>}, {pipeline_mode = #tpu.pipeline_mode<synchronous>, transform_indices = @transform_11, window_bounds = array<i64: 1, 32>}, {pipeline_mode = #tpu.pipeline_mode<synchronous>, transform_indices = @transform_12, window_bounds = array<i64: 1, 32>}, {transform_indices = @transform_13, window_bounds = array<i64: 16, 32>}]} {
    %c0 = arith.constant 0 : index
    %c0_0 = arith.constant 0 : index
    %0 = vector.load %arg1[%c0, %c0_0] : memref<16x32xf32, #tpu.memory_space<vmem>>, vector<16x32xf32>
    %1 = arith.truncf %0 : vector<16x32xf32> to vector<16x32xbf16>
    %c0_1 = arith.constant 0 : index
    %c0_2 = arith.constant 0 : index
    %2 = vector.load %arg3[%c0_1, %c0_2] : memref<32x96xbf16, #tpu.memory_space<vmem>>, vector<32x96xbf16>
    %cst = arith.constant dense<0.000000e+00> : vector<16x96xf32>
    %3 = tpu.matmul %1, %2, %cst {dimension_numbers = #tpu.dot_dimension_numbers<[1], [0], [0], [1], [0, 0, 1, 1], [], []>} : vector<16x32xbf16>, vector<32x96xbf16>, vector<16x96xf32> -> vector<16x96xf32>
    %4 = vector.extract_strided_slice %3 {offsets = [0, 0], sizes = [8, 8], strides = [1, 1]} : vector<16x96xf32> to vector<8x8xf32>
    %5 = vector.extract_strided_slice %3 {offsets = [0, 8], sizes = [8, 8], strides = [1, 1]} : vector<16x96xf32> to vector<8x8xf32>
    %6 = vector.extract_strided_slice %3 {offsets = [0, 16], sizes = [8, 8], strides = [1, 1]} : vector<16x96xf32> to vector<8x8xf32>
    %7 = vector.extract_strided_slice %3 {offsets = [0, 24], sizes = [8, 8], strides = [1, 1]} : vector<16x96xf32> to vector<8x8xf32>
    %8 = vector.extract_strided_slice %3 {offsets = [8, 0], sizes = [8, 8], strides = [1, 1]} : vector<16x96xf32> to vector<8x8xf32>
    %9 = vector.extract_strided_slice %3 {offsets = [8, 8], sizes = [8, 8], strides = [1, 1]} : vector<16x96xf32> to vector<8x8xf32>
    %10 = vector.extract_strided_slice %3 {offsets = [8, 16], sizes = [8, 8], strides = [1, 1]} : vector<16x96xf32> to vector<8x8xf32>
    %11 = vector.extract_strided_slice %3 {offsets = [8, 24], sizes = [8, 8], strides = [1, 1]} : vector<16x96xf32> to vector<8x8xf32>
    %12 = vector.shape_cast %4 : vector<8x8xf32> to vector<1x8x8xf32>
    %13 = vector.shape_cast %5 : vector<8x8xf32> to vector<1x8x8xf32>
    %14 = vector.shape_cast %6 : vector<8x8xf32> to vector<1x8x8xf32>
    %15 = vector.shape_cast %7 : vector<8x8xf32> to vector<1x8x8xf32>
    %16 = vector.shape_cast %8 : vector<8x8xf32> to vector<1x8x8xf32>
    %17 = vector.shape_cast %9 : vector<8x8xf32> to vector<1x8x8xf32>
    %18 = vector.shape_cast %10 : vector<8x8xf32> to vector<1x8x8xf32>
    %19 = vector.shape_cast %11 : vector<8x8xf32> to vector<1x8x8xf32>
    %20 = tpu.concatenate %12, %13, %14, %15, %16, %17, %18, %19 in 0 : vector<1x8x8xf32>, vector<1x8x8xf32>, vector<1x8x8xf32>, vector<1x8x8xf32>, vector<1x8x8xf32>, vector<1x8x8xf32>, vector<1x8x8xf32>, vector<1x8x8xf32> -> vector<8x8x8xf32>
    %21 = arith.truncf %20 : vector<8x8x8xf32> to vector<8x8x8xbf16>
    %22 = vector.extract_strided_slice %3 {offsets = [0, 32], sizes = [8, 8], strides = [1, 1]} : vector<16x96xf32> to vector<8x8xf32>
    %23 = vector.extract_strided_slice %3 {offsets = [0, 40], sizes = [8, 8], strides = [1, 1]} : vector<16x96xf32> to vector<8x8xf32>
    %24 = vector.extract_strided_slice %3 {offsets = [0, 48], sizes = [8, 8], strides = [1, 1]} : vector<16x96xf32> to vector<8x8xf32>
    %25 = vector.extract_strided_slice %3 {offsets = [0, 56], sizes = [8, 8], strides = [1, 1]} : vector<16x96xf32> to vector<8x8xf32>
    %26 = vector.extract_strided_slice %3 {offsets = [8, 32], sizes = [8, 8], strides = [1, 1]} : vector<16x96xf32> to vector<8x8xf32>
    %27 = vector.extract_strided_slice %3 {offsets = [8, 40], sizes = [8, 8], strides = [1, 1]} : vector<16x96xf32> to vector<8x8xf32>
    %28 = vector.extract_strided_slice %3 {offsets = [8, 48], sizes = [8, 8], strides = [1, 1]} : vector<16x96xf32> to vector<8x8xf32>
    %29 = vector.extract_strided_slice %3 {offsets = [8, 56], sizes = [8, 8], strides = [1, 1]} : vector<16x96xf32> to vector<8x8xf32>
    %30 = vector.shape_cast %22 : vector<8x8xf32> to vector<1x8x8xf32>
    %31 = vector.shape_cast %23 : vector<8x8xf32> to vector<1x8x8xf32>
    %32 = vector.shape_cast %24 : vector<8x8xf32> to vector<1x8x8xf32>
    %33 = vector.shape_cast %25 : vector<8x8xf32> to vector<1x8x8xf32>
    %34 = vector.shape_cast %26 : vector<8x8xf32> to vector<1x8x8xf32>
    %35 = vector.shape_cast %27 : vector<8x8xf32> to vector<1x8x8xf32>
    %36 = vector.shape_cast %28 : vector<8x8xf32> to vector<1x8x8xf32>
    %37 = vector.shape_cast %29 : vector<8x8xf32> to vector<1x8x8xf32>
    %38 = tpu.concatenate %30, %31, %32, %33, %34, %35, %36, %37 in 0 : vector<1x8x8xf32>, vector<1x8x8xf32>, vector<1x8x8xf32>, vector<1x8x8xf32>, vector<1x8x8xf32>, vector<1x8x8xf32>, vector<1x8x8xf32>, vector<1x8x8xf32> -> vector<8x8x8xf32>
    %39 = arith.truncf %38 : vector<8x8x8xf32> to vector<8x8x8xbf16>
    %40 = vector.extract_strided_slice %3 {offsets = [0, 64], sizes = [8, 8], strides = [1, 1]} : vector<16x96xf32> to vector<8x8xf32>
    %41 = vector.extract_strided_slice %3 {offsets = [0, 72], sizes = [8, 8], strides = [1, 1]} : vector<16x96xf32> to vector<8x8xf32>
    %42 = vector.extract_strided_slice %3 {offsets = [0, 80], sizes = [8, 8], strides = [1, 1]} : vector<16x96xf32> to vector<8x8xf32>
    %43 = vector.extract_strided_slice %3 {offsets = [0, 88], sizes = [8, 8], strides = [1, 1]} : vector<16x96xf32> to vector<8x8xf32>
    %44 = vector.extract_strided_slice %3 {offsets = [8, 64], sizes = [8, 8], strides = [1, 1]} : vector<16x96xf32> to vector<8x8xf32>
    %45 = vector.extract_strided_slice %3 {offsets = [8, 72], sizes = [8, 8], strides = [1, 1]} : vector<16x96xf32> to vector<8x8xf32>
    %46 = vector.extract_strided_slice %3 {offsets = [8, 80], sizes = [8, 8], strides = [1, 1]} : vector<16x96xf32> to vector<8x8xf32>
    %47 = vector.extract_strided_slice %3 {offsets = [8, 88], sizes = [8, 8], strides = [1, 1]} : vector<16x96xf32> to vector<8x8xf32>
    %48 = vector.shape_cast %40 : vector<8x8xf32> to vector<1x8x8xf32>
    %49 = vector.shape_cast %41 : vector<8x8xf32> to vector<1x8x8xf32>
    %50 = vector.shape_cast %42 : vector<8x8xf32> to vector<1x8x8xf32>
    %51 = vector.shape_cast %43 : vector<8x8xf32> to vector<1x8x8xf32>
    %52 = vector.shape_cast %44 : vector<8x8xf32> to vector<1x8x8xf32>
    %53 = vector.shape_cast %45 : vector<8x8xf32> to vector<1x8x8xf32>
    %54 = vector.shape_cast %46 : vector<8x8xf32> to vector<1x8x8xf32>
    %55 = vector.shape_cast %47 : vector<8x8xf32> to vector<1x8x8xf32>
    %56 = tpu.concatenate %48, %49, %50, %51, %52, %53, %54, %55 in 0 : vector<1x8x8xf32>, vector<1x8x8xf32>, vector<1x8x8xf32>, vector<1x8x8xf32>, vector<1x8x8xf32>, vector<1x8x8xf32>, vector<1x8x8xf32>, vector<1x8x8xf32> -> vector<8x8x8xf32>
    %57 = arith.truncf %56 : vector<8x8x8xf32> to vector<8x8x8xbf16>
    "tpu.trace_start"() <{level = 10 : i32, message = "nqd,nkd->nqk"}> : () -> ()
    %cst_3 = arith.constant dense<0.000000e+00> : vector<8x8x8xf32>
    %58 = tpu.matmul %21, %39, %cst_3 {dimension_numbers = #tpu.dot_dimension_numbers<[2], [2], [1], [1], [0, 0, 0, 1, 1, 1], [0], [0]>} : vector<8x8x8xbf16>, vector<8x8x8xbf16>, vector<8x8x8xf32> -> vector<8x8x8xf32>
    "tpu.trace_stop"() : () -> ()
    %cst_4 = arith.constant 0.353553385 : f32
    %59 = vector.broadcast %cst_4 : f32 to vector<8x8x8xf32>
    %60 = arith.mulf %58, %59 : vector<8x8x8xf32>
    %c0_5 = arith.constant 0 : index
    %c0_6 = arith.constant 0 : index
    %c0_7 = arith.constant 0 : index
    %61 = vector.load %arg2[%c0_5, %c0_6, %c0_7] : memref<8x1x8xf32, #tpu.memory_space<vmem>>, vector<8x1x8xf32>
    %62 = vector.broadcast %61 : vector<8x1x8xf32> to vector<8x8x8xf32>
    %63 = arith.addf %60, %62 : vector<8x8x8xf32>
    %cst_8 = arith.constant dense<0xFF800000> : vector<8x8xf32>
    %64 = vector.multi_reduction <maximumf>, %63, %cst_8 [2] : vector<8x8x8xf32> to vector<8x8xf32>
    %65 = vector.shape_cast %64 : vector<8x8xf32> to vector<8x8x1xf32>
    %66 = vector.broadcast %65 : vector<8x8x1xf32> to vector<8x8x8xf32>
    %67 = arith.subf %63, %66 : vector<8x8x8xf32>
    %68 = math.exp %67 : vector<8x8x8xf32>
    %cst_9 = arith.constant dense<0.000000e+00> : vector<8x8xf32>
    %69 = vector.multi_reduction <add>, %68, %cst_9 [2] : vector<8x8x8xf32> to vector<8x8xf32>
    %70 = vector.shape_cast %69 : vector<8x8xf32> to vector<8x8x1xf32>
    %71 = tpu.reciprocal %70 {approx = true} : vector<8x8x1xf32> -> vector<8x8x1xf32>
    %72 = vector.broadcast %71 : vector<8x8x1xf32> to vector<8x8x8xf32>
    %73 = arith.mulf %68, %72 : vector<8x8x8xf32>
    %74 = arith.truncf %73 : vector<8x8x8xf32> to vector<8x8x8xbf16>
    "tpu.trace_start"() <{level = 10 : i32, message = "nqk,nkd->nqd"}> : () -> ()
    %cst_10 = arith.constant dense<0.000000e+00> : vector<8x8x8xf32>
    %75 = tpu.matmul %74, %57, %cst_10 {dimension_numbers = #tpu.dot_dimension_numbers<[2], [1], [1], [2], [0, 0, 0, 1, 1, 2], [0], [0]>} : vector<8x8x8xbf16>, vector<8x8x8xbf16>, vector<8x8x8xf32> -> vector<8x8x8xf32>
    "tpu.trace_stop"() : () -> ()
    %76 = vector.extract_strided_slice %75 {offsets = [0, 0, 0], sizes = [1, 8, 8], strides = [1, 1, 1]} : vector<8x8x8xf32> to vector<1x8x8xf32>
    %77 = vector.shape_cast %76 : vector<1x8x8xf32> to vector<8x8xf32>
    %78 = vector.extract_strided_slice %75 {offsets = [1, 0, 0], sizes = [1, 8, 8], strides = [1, 1, 1]} : vector<8x8x8xf32> to vector<1x8x8xf32>
    %79 = vector.shape_cast %78 : vector<1x8x8xf32> to vector<8x8xf32>
    %80 = vector.extract_strided_slice %75 {offsets = [2, 0, 0], sizes = [1, 8, 8], strides = [1, 1, 1]} : vector<8x8x8xf32> to vector<1x8x8xf32>
    %81 = vector.shape_cast %80 : vector<1x8x8xf32> to vector<8x8xf32>
    %82 = vector.extract_strided_slice %75 {offsets = [3, 0, 0], sizes = [1, 8, 8], strides = [1, 1, 1]} : vector<8x8x8xf32> to vector<1x8x8xf32>
    %83 = vector.shape_cast %82 : vector<1x8x8xf32> to vector<8x8xf32>
    %84 = tpu.concatenate %77, %79, %81, %83 in 1 : vector<8x8xf32>, vector<8x8xf32>, vector<8x8xf32>, vector<8x8xf32> -> vector<8x32xf32>
    %85 = vector.extract_strided_slice %75 {offsets = [4, 0, 0], sizes = [1, 8, 8], strides = [1, 1, 1]} : vector<8x8x8xf32> to vector<1x8x8xf32>
    %86 = vector.shape_cast %85 : vector<1x8x8xf32> to vector<8x8xf32>
    %87 = vector.extract_strided_slice %75 {offsets = [5, 0, 0], sizes = [1, 8, 8], strides = [1, 1, 1]} : vector<8x8x8xf32> to vector<1x8x8xf32>
    %88 = vector.shape_cast %87 : vector<1x8x8xf32> to vector<8x8xf32>
    %89 = vector.extract_strided_slice %75 {offsets = [6, 0, 0], sizes = [1, 8, 8], strides = [1, 1, 1]} : vector<8x8x8xf32> to vector<1x8x8xf32>
    %90 = vector.shape_cast %89 : vector<1x8x8xf32> to vector<8x8xf32>
    %91 = vector.extract_strided_slice %75 {offsets = [7, 0, 0], sizes = [1, 8, 8], strides = [1, 1, 1]} : vector<8x8x8xf32> to vector<1x8x8xf32>
    %92 = vector.shape_cast %91 : vector<1x8x8xf32> to vector<8x8xf32>
    %93 = tpu.concatenate %86, %88, %90, %92 in 1 : vector<8x8xf32>, vector<8x8xf32>, vector<8x8xf32>, vector<8x8xf32> -> vector<8x32xf32>
    %94 = tpu.concatenate %84, %93 in 0 : vector<8x32xf32>, vector<8x32xf32> -> vector<16x32xf32>
    %95 = arith.truncf %94 : vector<16x32xf32> to vector<16x32xbf16>
    %c0_11 = arith.constant 0 : index
    %c0_12 = arith.constant 0 : index
    %96 = vector.load %arg4[%c0_11, %c0_12] : memref<32x32xbf16, #tpu.memory_space<vmem>>, vector<32x32xbf16>
    %cst_13 = arith.constant dense<0.000000e+00> : vector<16x32xf32>
    %97 = tpu.matmul %95, %96, %cst_13 {dimension_numbers = #tpu.dot_dimension_numbers<[1], [0], [0], [1], [0, 0, 1, 1], [], []>} : vector<16x32xbf16>, vector<32x32xbf16>, vector<16x32xf32> -> vector<16x32xf32>
    %c0_14 = arith.constant 0 : index
    %c0_15 = arith.constant 0 : index
    %98 = vector.load %arg5[%c0_14, %c0_15] : memref<1x32xf32, #tpu.memory_space<vmem>>, vector<1x32xf32>
    %99 = vector.shape_cast %98 : vector<1x32xf32> to vector<32xf32>
    %100 = vector.shape_cast %99 : vector<32xf32> to vector<1x32xf32>
    %101 = vector.broadcast %100 : vector<1x32xf32> to vector<16x32xf32>
    %102 = arith.addf %97, %101 : vector<16x32xf32>
    %103 = arith.addf %0, %102 : vector<16x32xf32>
    %cst_16 = arith.constant dense<0.000000e+00> : vector<16xf32>
    %104 = vector.multi_reduction <add>, %103, %cst_16 [1] : vector<16x32xf32> to vector<16xf32>
    %105 = vector.shape_cast %104 : vector<16xf32> to vector<16x1xf32>
    %cst_17 = arith.constant 3.200000e+01 : f32
    %106 = vector.broadcast %cst_17 : f32 to vector<16x1xf32>
    %107 = arith.divf %105, %106 : vector<16x1xf32>
    %108 = vector.broadcast %107 : vector<16x1xf32> to vector<16x32xf32>
    %109 = arith.subf %103, %108 : vector<16x32xf32>
    %110 = arith.mulf %109, %109 : vector<16x32xf32>
    %cst_18 = arith.constant dense<0.000000e+00> : vector<16xf32>
    %111 = vector.multi_reduction <add>, %110, %cst_18 [1] : vector<16x32xf32> to vector<16xf32>
    %112 = vector.shape_cast %111 : vector<16xf32> to vector<16x1xf32>
    %cst_19 = arith.constant 3.200000e+01 : f32
    %113 = vector.broadcast %cst_19 : f32 to vector<16x1xf32>
    %114 = arith.divf %112, %113 : vector<16x1xf32>
    %115 = vector.broadcast %107 : vector<16x1xf32> to vector<16x32xf32>
    %116 = arith.subf %103, %115 : vector<16x32xf32>
    %cst_20 = arith.constant 9.99999974E-6 : f32
    %117 = vector.broadcast %cst_20 : f32 to vector<16x1xf32>
    %118 = arith.addf %114, %117 : vector<16x1xf32>
    %119 = math.rsqrt %118 : vector<16x1xf32>
    %120 = vector.broadcast %119 : vector<16x1xf32> to vector<16x32xf32>
    %121 = arith.mulf %116, %120 : vector<16x32xf32>
    %c0_21 = arith.constant 0 : index
    %c0_22 = arith.constant 0 : index
    %122 = vector.load %arg10[%c0_21, %c0_22] : memref<1x32xf32, #tpu.memory_space<vmem>>, vector<1x32xf32>
    %123 = vector.shape_cast %122 : vector<1x32xf32> to vector<32xf32>
    %124 = vector.shape_cast %123 : vector<32xf32> to vector<1x32xf32>
    %125 = vector.broadcast %124 : vector<1x32xf32> to vector<16x32xf32>
    %126 = arith.mulf %121, %125 : vector<16x32xf32>
    %c0_23 = arith.constant 0 : index
    %c0_24 = arith.constant 0 : index
    %127 = vector.load %arg11[%c0_23, %c0_24] : memref<1x32xf32, #tpu.memory_space<vmem>>, vector<1x32xf32>
    %128 = vector.shape_cast %127 : vector<1x32xf32> to vector<32xf32>
    %129 = vector.shape_cast %128 : vector<32xf32> to vector<1x32xf32>
    %130 = vector.broadcast %129 : vector<1x32xf32> to vector<16x32xf32>
    %131 = arith.addf %126, %130 : vector<16x32xf32>
    %132 = arith.truncf %131 : vector<16x32xf32> to vector<16x32xbf16>
    %c0_25 = arith.constant 0 : index
    %c0_26 = arith.constant 0 : index
    %133 = vector.load %arg6[%c0_25, %c0_26] : memref<32x64xbf16, #tpu.memory_space<vmem>>, vector<32x64xbf16>
    %cst_27 = arith.constant dense<0.000000e+00> : vector<16x64xf32>
    %134 = tpu.matmul %132, %133, %cst_27 {dimension_numbers = #tpu.dot_dimension_numbers<[1], [0], [0], [1], [0, 0, 1, 1], [], []>} : vector<16x32xbf16>, vector<32x64xbf16>, vector<16x64xf32> -> vector<16x64xf32>
    %c0_28 = arith.constant 0 : index
    %c0_29 = arith.constant 0 : index
    %135 = vector.load %arg7[%c0_28, %c0_29] : memref<1x64xf32, #tpu.memory_space<vmem>>, vector<1x64xf32>
    %136 = vector.shape_cast %135 : vector<1x64xf32> to vector<64xf32>
    %137 = vector.shape_cast %136 : vector<64xf32> to vector<1x64xf32>
    %138 = vector.broadcast %137 : vector<1x64xf32> to vector<16x64xf32>
    %139 = arith.addf %134, %138 : vector<16x64xf32>
    %cst_30 = arith.constant 0.000000e+00 : f32
    %140 = vector.broadcast %cst_30 : f32 to vector<16x64xf32>
    %141 = arith.maximumf %139, %140 : vector<16x64xf32>
    %142 = arith.truncf %141 : vector<16x64xf32> to vector<16x64xbf16>
    %c0_31 = arith.constant 0 : index
    %c0_32 = arith.constant 0 : index
    %143 = vector.load %arg8[%c0_31, %c0_32] : memref<64x32xbf16, #tpu.memory_space<vmem>>, vector<64x32xbf16>
    %cst_33 = arith.constant dense<0.000000e+00> : vector<16x32xf32>
    %144 = tpu.matmul %142, %143, %cst_33 {dimension_numbers = #tpu.dot_dimension_numbers<[1], [0], [0], [1], [0, 0, 1, 1], [], []>} : vector<16x64xbf16>, vector<64x32xbf16>, vector<16x32xf32> -> vector<16x32xf32>
    %c0_34 = arith.constant 0 : index
    %c0_35 = arith.constant 0 : index
    %145 = vector.load %arg9[%c0_34, %c0_35] : memref<1x32xf32, #tpu.memory_space<vmem>>, vector<1x32xf32>
    %146 = vector.shape_cast %145 : vector<1x32xf32> to vector<32xf32>
    %147 = vector.shape_cast %146 : vector<32xf32> to vector<1x32xf32>
    %148 = vector.broadcast %147 : vector<1x32xf32> to vector<16x32xf32>
    %149 = arith.addf %144, %148 : vector<16x32xf32>
    %150 = arith.addf %131, %149 : vector<16x32xf32>
    %cst_36 = arith.constant dense<0.000000e+00> : vector<16xf32>
    %151 = vector.multi_reduction <add>, %150, %cst_36 [1] : vector<16x32xf32> to vector<16xf32>
    %152 = vector.shape_cast %151 : vector<16xf32> to vector<16x1xf32>
    %cst_37 = arith.constant 3.200000e+01 : f32
    %153 = vector.broadcast %cst_37 : f32 to vector<16x1xf32>
    %154 = arith.divf %152, %153 : vector<16x1xf32>
    %155 = vector.broadcast %154 : vector<16x1xf32> to vector<16x32xf32>
    %156 = arith.subf %150, %155 : vector<16x32xf32>
    %157 = arith.mulf %156, %156 : vector<16x32xf32>
    %cst_38 = arith.constant dense<0.000000e+00> : vector<16xf32>
    %158 = vector.multi_reduction <add>, %157, %cst_38 [1] : vector<16x32xf32> to vector<16xf32>
    %159 = vector.shape_cast %158 : vector<16xf32> to vector<16x1xf32>
    %cst_39 = arith.constant 3.200000e+01 : f32
    %160 = vector.broadcast %cst_39 : f32 to vector<16x1xf32>
    %161 = arith.divf %159, %160 : vector<16x1xf32>
    %162 = vector.broadcast %154 : vector<16x1xf32> to vector<16x32xf32>
    %163 = arith.subf %150, %162 : vector<16x32xf32>
    %cst_40 = arith.constant 9.99999974E-6 : f32
    %164 = vector.broadcast %cst_40 : f32 to vector<16x1xf32>
    %165 = arith.addf %161, %164 : vector<16x1xf32>
    %166 = math.rsqrt %165 : vector<16x1xf32>
    %167 = vector.broadcast %166 : vector<16x1xf32> to vector<16x32xf32>
    %168 = arith.mulf %163, %167 : vector<16x32xf32>
    %c0_41 = arith.constant 0 : index
    %c0_42 = arith.constant 0 : index
    %169 = vector.load %arg12[%c0_41, %c0_42] : memref<1x32xf32, #tpu.memory_space<vmem>>, vector<1x32xf32>
    %170 = vector.shape_cast %169 : vector<1x32xf32> to vector<32xf32>
    %171 = vector.shape_cast %170 : vector<32xf32> to vector<1x32xf32>
    %172 = vector.broadcast %171 : vector<1x32xf32> to vector<16x32xf32>
    %173 = arith.mulf %168, %172 : vector<16x32xf32>
    %c0_43 = arith.constant 0 : index
    %c0_44 = arith.constant 0 : index
    %174 = vector.load %arg13[%c0_43, %c0_44] : memref<1x32xf32, #tpu.memory_space<vmem>>, vector<1x32xf32>
    %175 = vector.shape_cast %174 : vector<1x32xf32> to vector<32xf32>
    %176 = vector.shape_cast %175 : vector<32xf32> to vector<1x32xf32>
    %177 = vector.broadcast %176 : vector<1x32xf32> to vector<16x32xf32>
    %178 = arith.addf %173, %177 : vector<16x32xf32>
    %c0_45 = arith.constant 0 : index
    %c0_46 = arith.constant 0 : index
    %179 = vector.load %arg14[%c0_45, %c0_46] : memref<16x32xf32, #tpu.memory_space<vmem>>, vector<16x32xf32>
    tpu.vector_store %arg14[%c0_45, %c0_46], %178 {strides = array<i32>} : memref<16x32xf32, #tpu.memory_space<vmem>>, vector<16x32xf32>,
    return
  }
  func.func @transform_0(%arg0: i32) -> (i32, i32) {
    %c0_i32 = arith.constant 0 : i32
    %c0_i32_0 = arith.constant 0 : i32
    return %arg0, %c0_i32 : i32, i32
  }
  func.func @transform_1(%arg0: i32) -> (i32, i32, i32) {
    %c0_i32 = arith.constant 0 : i32
    %c0_i32_0 = arith.constant 0 : i32
    %c0_i32_1 = arith.constant 0 : i32
    return %arg0, %c0_i32, %c0_i32_0 : i32, i32, i32
  }
  func.func @transform_2(%arg0: i32) -> (i32, i32) {
    %c0_i32 = arith.constant 0 : i32
    %c0_i32_0 = arith.constant 0 : i32
    %c0_i32_1 = arith.constant 0 : i32
    return %c0_i32, %c0_i32_0 : i32, i32
  }
  func.func @transform_3(%arg0: i32) -> (i32, i32) {
    %c0_i32 = arith.constant 0 : i32
    %c0_i32_0 = arith.constant 0 : i32
    %c0_i32_1 = arith.constant 0 : i32
    return %c0_i32, %c0_i32_0 : i32, i32
  }
  func.func @transform_4(%arg0: i32) -> (i32, i32) {
    %c0_i32 = arith.constant 0 : i32
    %c0_i32_0 = arith.constant 0 : i32
    %c0_i32_1 = arith.constant 0 : i32
    return %c0_i32, %c0_i32_0 : i32, i32
  }
  func.func @transform_5(%arg0: i32) -> (i32, i32) {
    %c0_i32 = arith.constant 0 : i32
    %c0_i32_0 = arith.constant 0 : i32
    %c0_i32_1 = arith.constant 0 : i32
    return %c0_i32, %c0_i32_0 : i32, i32
  }
  func.func @transform_6(%arg0: i32) -> (i32, i32) {
    %c0_i32 = arith.constant 0 : i32
    %c0_i32_0 = arith.constant 0 : i32
    %c0_i32_1 = arith.constant 0 : i32
    return %c0_i32, %c0_i32_0 : i32, i32
  }
  func.func @transform_7(%arg0: i32) -> (i32, i32) {
    %c0_i32 = arith.constant 0 : i32
    %c0_i32_0 = arith.constant 0 : i32
    %c0_i32_1 = arith.constant 0 : i32
    return %c0_i32, %c0_i32_0 : i32, i32
  }
  func.func @transform_8(%arg0: i32) -> (i32, i32) {
    %c0_i32 = arith.constant 0 : i32
    %c0_i32_0 = arith.constant 0 : i32
    %c0_i32_1 = arith.constant 0 : i32
    return %c0_i32, %c0_i32_0 : i32, i32
  }
  func.func @transform_9(%arg0: i32) -> (i32, i32) {
    %c0_i32 = arith.constant 0 : i32
    %c0_i32_0 = arith.constant 0 : i32
    %c0_i32_1 = arith.constant 0 : i32
    return %c0_i32, %c0_i32_0 : i32, i32
  }
  func.func @transform_10(%arg0: i32) -> (i32, i32) {
    %c0_i32 = arith.constant 0 : i32
    %c0_i32_0 = arith.constant 0 : i32
    %c0_i32_1 = arith.constant 0 : i32
    return %c0_i32, %c0_i32_0 : i32, i32
  }
  func.func @transform_11(%arg0: i32) -> (i32, i32) {
    %c0_i32 = arith.constant 0 : i32
    %c0_i32_0 = arith.constant 0 : i32
    %c0_i32_1 = arith.constant 0 : i32
    return %c0_i32, %c0_i32_0 : i32, i32
  }
  func.func @transform_12(%arg0: i32) -> (i32, i32) {
    %c0_i32 = arith.constant 0 : i32
    %c0_i32_0 = arith.constant 0 : i32
    %c0_i32_1 = arith.constant 0 : i32
    return %c0_i32, %c0_i32_0 : i32, i32
  }
  func.func @transform_13(%arg0: i32) -> (i32, i32) {
    %c0_i32 = arith.constant 0 : i32
    %c0_i32_0 = arith.constant 0 : i32
    return %arg0, %c0_i32 : i32, i32
  }
}

</mosaic_0001>

<llo_original>
// kernel: tpu_custom_call.1
$region0: #{tpu_custom_call.1}
  #allocation0 [shape = 'u32[]', space=smem, size = 0x4, offset = 0x4, fixed_abs, tag = 'smem constant byte address 0x4 - core index']
  #allocation1 [shape = 'u32[144,128]{1,0:T(1,128)}', space=vmem, size = 0x12000, scoped, tag = 'internal scratch']
  %s0 = inlined_call_operand.vmem [shape: f32[16,32], index: 0, kind: input, shape index: {}]
  %s1 = inlined_call_operand.hbm [shape: f32[8,1,8], index: 1, kind: input, shape index: {}]
  %s2 = inlined_call_operand.vmem [shape: bf16[32,96], index: 2, kind: input, shape index: {}]
  %s3 = inlined_call_operand.vmem [shape: bf16[32,32], index: 3, kind: input, shape index: {}]
  %s4 = inlined_call_operand.vmem [shape: f32[1,32], index: 4, kind: input, shape index: {}]
  %s5 = inlined_call_operand.hbm [shape: bf16[32,64], index: 5, kind: input, shape index: {}]
  %s6 = inlined_call_operand.vmem [shape: f32[1,64], index: 6, kind: input, shape index: {}]
  %s7 = inlined_call_operand.vmem [shape: bf16[64,32], index: 7, kind: input, shape index: {}]
  %s8 = inlined_call_operand.vmem [shape: f32[1,32], index: 8, kind: input, shape index: {}]
  %s9 = inlined_call_operand.vmem [shape: f32[1,32], index: 9, kind: input, shape index: {}]
  %s10 = inlined_call_operand.vmem [shape: f32[1,32], index: 10, kind: input, shape index: {}]
  %s11 = inlined_call_operand.vmem [shape: f32[1,32], index: 11, kind: input, shape index: {}]
  %s12 = inlined_call_operand.vmem [shape: f32[1,32], index: 12, kind: input, shape index: {}]
  %s13 = inlined_call_operand.hbm [shape: f32[16,32], index: 13, kind: output, shape index: {}]
  %s14 = sld [smem:[#allocation0]]
  $region70: #{tpu_custom_call.1} parent=0
    _
  %s16 = ssub.s32 1, %s14
  %s17 = scalar_select 0, %s16, %s14
  $region1: #{tpu_custom_call.1} parent=0
    #allocation2 [shape = 'u8[4096]{0}', space=vmem, size = 0x1000, scoped, tag = 'input window, operand 1, single buffered']
    #allocation3 [shape = 's32[1]{0}', space=sflag, size = 0x4, scoped, tag = 'scoped memory for tpu_custom_call.1']
    #allocation4 [shape = 's32[1]{0}', space=sflag, size = 0x4, scoped, tag = 'scoped memory for tpu_custom_call.1']
    #allocation5 [shape = 'u8[8192]{0}', space=vmem, size = 0x2000, scoped, tag = 'input window, operand 5, single buffered']
    #allocation6 [shape = 's32[1]{0}', space=sflag, size = 0x4, scoped, tag = 'scoped memory for tpu_custom_call.1']
    #allocation7 [shape = 'u8[8192]{0}', space=vmem, size = 0x2000, scoped, tag = 'output window, operand 0, single buffered']
    %18 = vsyncpa [#allocation3], 0
    %19 = vsyncpa [#allocation6], 0
    %20 = vsyncpa [#allocation4], 0
    // Predicated region
    $region2: #{tpu_custom_call.1} parent=1 // pred_check
      _
    $region3: #{tpu_custom_call.1} parent=1 // pred_check_branch
      %22 = sbr.rel (0) target = $region5
    $region4: #{tpu_custom_call.1} parent=1 // pred_region
      _
    $region5: #{tpu_custom_call.1} parent=1 // pred_fallthru
      _
    // Predicated region
    $region6: #{tpu_custom_call.1} parent=1 // pred_check
      _
    $region7: #{tpu_custom_call.1} parent=1 // pred_check_branch
      %24 = sbr.rel (0) target = $region9
    $region8: #{tpu_custom_call.1} parent=1 // pred_region
      %s26 = ssub.s32 128, 128
      %27 = vsyncadd [#allocation3], %s26
      %s28 = sshll.u32 [#allocation2], 4
      %s29 = int_to_ptr.vmem [resolvable:$true] %s28
      %34 = dma.hbm_to_vmem [thread:$0]  %s1, 128, %s29, [#allocation3], 16, 16, 1
    $region9: #{tpu_custom_call.1} parent=1 // pred_fallthru
      _
    // Predicated region
    $region10: #{tpu_custom_call.1} parent=1 // pred_check
      _
    $region11: #{tpu_custom_call.1} parent=1 // pred_check_branch
      %36 = sbr.rel (0) target = $region13
    $region12: #{tpu_custom_call.1} parent=1 // pred_region
      _
    $region13: #{tpu_custom_call.1} parent=1 // pred_fallthru
      _
    // Predicated region
    $region14: #{tpu_custom_call.1} parent=1 // pred_check
      _
    $region15: #{tpu_custom_call.1} parent=1 // pred_check_branch
      %38 = sbr.rel (0) target = $region17
    $region16: #{tpu_custom_call.1} parent=1 // pred_region
      _
    $region17: #{tpu_custom_call.1} parent=1 // pred_fallthru
      _
    // Predicated region
    $region18: #{tpu_custom_call.1} parent=1 // pred_check
      _
    $region19: #{tpu_custom_call.1} parent=1 // pred_check_branch
      %40 = sbr.rel (0) target = $region21
    $region20: #{tpu_custom_call.1} parent=1 // pred_region
      _
    $region21: #{tpu_custom_call.1} parent=1 // pred_fallthru
      _
    // Predicated region
    $region22: #{tpu_custom_call.1} parent=1 // pred_check
      _
    $region23: #{tpu_custom_call.1} parent=1 // pred_check_branch
      %42 = sbr.rel (0) target = $region25
    $region24: #{tpu_custom_call.1} parent=1 // pred_region
      %s44 = ssub.s32 256, 256
      %45 = vsyncadd [#allocation6], %s44
      %s46 = sshll.u32 [#allocation5], 4
      %s47 = int_to_ptr.vmem [resolvable:$true] %s46
      %52 = dma.hbm_to_vmem [thread:$0]  %s5, 256, %s47, [#allocation6], 64, 64, 4
    $region25: #{tpu_custom_call.1} parent=1 // pred_fallthru
      _
    // Predicated region
    $region26: #{tpu_custom_call.1} parent=1 // pred_check
      _
    $region27: #{tpu_custom_call.1} parent=1 // pred_check_branch
      %54 = sbr.rel (0) target = $region29
    $region28: #{tpu_custom_call.1} parent=1 // pred_region
      _
    $region29: #{tpu_custom_call.1} parent=1 // pred_fallthru
      _
    // Predicated region
    $region30: #{tpu_custom_call.1} parent=1 // pred_check
      _
    $region31: #{tpu_custom_call.1} parent=1 // pred_check_branch
      %56 = sbr.rel (0) target = $region33
    $region32: #{tpu_custom_call.1} parent=1 // pred_region
      _
    $region33: #{tpu_custom_call.1} parent=1 // pred_fallthru
      _
    // Predicated region
    $region34: #{tpu_custom_call.1} parent=1 // pred_check
      _
    $region35: #{tpu_custom_call.1} parent=1 // pred_check_branch
      %58 = sbr.rel (0) target = $region37
    $region36: #{tpu_custom_call.1} parent=1 // pred_region
      _
    $region37: #{tpu_custom_call.1} parent=1 // pred_fallthru
      _
    // Predicated region
    $region38: #{tpu_custom_call.1} parent=1 // pred_check
      _
    $region39: #{tpu_custom_call.1} parent=1 // pred_check_branch
      %60 = sbr.rel (0) target = $region41
    $region40: #{tpu_custom_call.1} parent=1 // pred_region
      _
    $region41: #{tpu_custom_call.1} parent=1 // pred_fallthru
      _
    // Predicated region
    $region42: #{tpu_custom_call.1} parent=1 // pred_check
      _
    $region43: #{tpu_custom_call.1} parent=1 // pred_check_branch
      %62 = sbr.rel (0) target = $region45
    $region44: #{tpu_custom_call.1} parent=1 // pred_region
      _
    $region45: #{tpu_custom_call.1} parent=1 // pred_fallthru
      _
    // Predicated region
    $region46: #{tpu_custom_call.1} parent=1 // pred_check
      _
    $region47: #{tpu_custom_call.1} parent=1 // pred_check_branch
      %64 = sbr.rel (0) target = $region49
    $region48: #{tpu_custom_call.1} parent=1 // pred_region
      _
    $region49: #{tpu_custom_call.1} parent=1 // pred_fallthru
      _
    // Predicated region
    $region50: #{tpu_custom_call.1} parent=1 // pred_check
      _
    $region51: #{tpu_custom_call.1} parent=1 // pred_check_branch
      %66 = sbr.rel (0) target = $region53
    $region52: #{tpu_custom_call.1} parent=1 // pred_region
      _
    $region53: #{tpu_custom_call.1} parent=1 // pred_fallthru
      _
    // Predicated region
    $region54: #{tpu_custom_call.1} parent=1 // pred_check
      _
    $region55: #{tpu_custom_call.1} parent=1 // pred_check_branch
      %68 = sbr.rel (0) target = $region57
    $region56: #{tpu_custom_call.1} parent=1 // pred_region
      %69 = dma.done [#allocation3], 128
    $region57: #{tpu_custom_call.1} parent=1 // pred_fallthru
      _
    // Predicated region
    $region58: #{tpu_custom_call.1} parent=1 // pred_check
      _
    $region59: #{tpu_custom_call.1} parent=1 // pred_check_branch
      %71 = sbr.rel (0) target = $region61
    $region60: #{tpu_custom_call.1} parent=1 // pred_region
      %72 = dma.done [#allocation6], 256
    $region61: #{tpu_custom_call.1} parent=1 // pred_fallthru
      _
    %v74 = vld [vmem:[%s0] sm:$0xff]
    %v75 = vld [vmem:[%s0 + $0x8] sm:$0xff]
    %v76 = vpack.c.bf16 %v75, %v74
    %v77 = vld [vmem:[%s2] sm:$0xf]
    %v78 = vld [vmem:[%s2 + $0x4] sm:$0xf]
    %v79 = vld [vmem:[%s2 + $0x8] sm:$0xf]
    %v80 = vld [vmem:[%s2 + $0xc] sm:$0xf]
    %v85 = vunpack.c.l.b16 %v77
    %v86 = vunpack.c.l.b16 %v78
    %v87 = vunpack.c.l.b16 %v79
    %v88 = vunpack.c.l.b16 %v80
    %v89 = vpack.c.b16 %v86, %v85
    %v90 = vpack.c.b16 %v88, %v87
    %vm93 = vcmask 261120
    %v95 = vsel %vm93, %v76, 0
    %97 = vmatprep.subr.bf16.mxu0 0
    %98 = vmatpush1.bf16.msra.mxu0 %v89
    %99 = vmatprep.subr.bf16.mxu0 0
    %100 = vmatpush1.bf16.msra.mxu0 %v90
    %101 = vmatprep.subr.bf16.mxu0 0
    %102 = vmatpush1.bf16.msra.mxu0 0
    %103 = vmatprep.subr.bf16.mxu0 0
    %104 = vmatpush1.bf16.msra.mxu0 0
    %105 = vmatprep.subr.bf16.mxu0 0
    %106 = vmatpush1.bf16.msra.mxu0 0
    %107 = vmatprep.subr.bf16.mxu0 0
    %108 = vmatpush1.bf16.msra.mxu0 0
    %109 = vmatprep.subr.bf16.mxu0 0
    %110 = vmatpush1.bf16.msra.mxu0 0
    %111 = vmatprep.subr.bf16.mxu0 0
    %112 = vmatpush1.bf16.msra.mxu0 0
    %113 = vmatprep.subr.bf16.mxu0 0
    %114 = vmatpush1.bf16.msra.mxu0 0
    %115 = vmatprep.subr.bf16.mxu0 0
    %116 = vmatpush1.bf16.msra.mxu0 0
    %117 = vmatprep.subr.bf16.mxu0 0
    %118 = vmatpush1.bf16.msra.mxu0 0
    %119 = vmatprep.subr.bf16.mxu0 0
    %120 = vmatpush1.bf16.msra.mxu0 0
    %121 = vmatprep.subr.bf16.mxu0 0
    %122 = vmatpush1.bf16.msra.mxu0 0
    %123 = vmatprep.subr.bf16.mxu0 0
    %124 = vmatpush1.bf16.msra.mxu0 0
    %125 = vmatprep.subr.bf16.mxu0 0
    %126 = vmatpush1.bf16.msra.mxu0 0
    %127 = vmatprep.subr.bf16.mxu0 0
    %128 = vmatpush1.bf16.msra.mxu0 0
    %129 = vmatprep.mubr.bf16.mxu0 0
    %130 = vmatmul.mubr.bf16.gmra.mrb[0].mxu0 %v95
    %v131 = vpop.f32.mrb[0].mxu0
    %v132 = vadd.f32 0.0, %v131
    %v133 = vpop.f32.mrb[0].mxu0
    %v134 = vpop.f32.mrb[0].mxu0
    %v135 = vadd.f32 0.0, %v134
    %v136 = vpop.f32.mrb[0].mxu0
    %137 = vdwg.mxu0
    %139 = vrot.lane.b32.xlu0 %v132, 120
    %v140 = vpop.permute.xlu0 %139
    %142 = vrot.lane.b32.xlu0 %v132, 112
    %v143 = vpop.permute.xlu0 %142
    %145 = vrot.lane.b32.xlu0 %v132, 104
    %v146 = vpop.permute.xlu0 %145
    %149 = vrot.lane.b32.xlu0 %v135, 120
    %v150 = vpop.permute.xlu0 %149
    %152 = vrot.lane.b32.xlu0 %v135, 112
    %v153 = vpop.permute.xlu0 %152
    %155 = vrot.lane.b32.xlu0 %v135, 104
    %v156 = vpop.permute.xlu0 %155
    %v158 = vpack.c.bf16 %v132, %v132
    %v159 = vpack.c.bf16 %v140, %v140
    %v160 = vpack.c.bf16 %v143, %v143
    %v161 = vpack.c.bf16 %v146, %v146
    %v162 = vpack.c.bf16 %v135, %v135
    %v163 = vpack.c.bf16 %v150, %v150
    %v164 = vpack.c.bf16 %v153, %v153
    %v165 = vpack.c.bf16 %v156, %v156
    %167 = vrot.lane.b32.xlu0 %v158, 96
    %v168 = vpop.permute.xlu0 %167
    %vm169 = vcmask 64512
    %v171 = vsel %vm169, %v158, 0
    %v174 = vsel %vm169, %v168, 0
    %176 = vmatprep.subr.bf16.mxu0 0
    %177 = vmatpush1.bf16.xpose.msra.mxu0 %v174
    %178 = vmatprep.subr.bf16.mxu0 0
    %179 = vmatpush1.bf16.xpose.msra.mxu0 0
    %180 = vmatprep.subr.bf16.mxu0 0
    %181 = vmatpush1.bf16.xpose.msra.mxu0 0
    %182 = vmatprep.subr.bf16.mxu0 0
    %183 = vmatpush1.bf16.xpose.msra.mxu0 0
    %184 = vmatprep.subr.bf16.mxu0 0
    %185 = vmatpush1.bf16.xpose.msra.mxu0 0
    %186 = vmatprep.subr.bf16.mxu0 0
    %187 = vmatpush1.bf16.xpose.msra.mxu0 0
    %188 = vmatprep.subr.bf16.mxu0 0
    %189 = vmatpush1.bf16.xpose.msra.mxu0 0
    %190 = vmatprep.subr.bf16.mxu0 0
    %191 = vmatpush1.bf16.xpose.msra.mxu0 0
    %192 = vmatprep.subr.bf16.mxu0 0
    %193 = vmatpush1.bf16.xpose.msra.mxu0 0
    %194 = vmatprep.subr.bf16.mxu0 0
    %195 = vmatpush1.bf16.xpose.msra.mxu0 0
    %196 = vmatprep.subr.bf16.mxu0 0
    %197 = vmatpush1.bf16.xpose.msra.mxu0 0
    %198 = vmatprep.subr.bf16.mxu0 0
    %199 = vmatpush1.bf16.xpose.msra.mxu0 0
    %200 = vmatprep.subr.bf16.mxu0 0
    %201 = vmatpush1.bf16.xpose.msra.mxu0 0
    %202 = vmatprep.subr.bf16.mxu0 0
    %203 = vmatpush1.bf16.xpose.msra.mxu0 0
    %204 = vmatprep.subr.bf16.mxu0 0
    %205 = vmatpush1.bf16.xpose.msra.mxu0 0
    %206 = vmatprep.subr.bf16.mxu0 0
    %207 = vmatpush1.bf16.xpose.msra.mxu0 0
    %208 = vmatprep.mubr.bf16.mxu0 0
    %209 = vmatmul.mubr.bf16.gmra.mrb[0].mxu0 %v171
    %v210 = vpop.f32.mrb[0].mxu0
    %v211 = vadd.f32 0.0, %v210
    %v212 = vpop.f32.mrb[0].mxu0
    %v213 = vpop.f32.mrb[0].mxu0
    %v214 = vpop.f32.mrb[0].mxu0
    %215 = vdwg.mxu0
    %217 = vrot.lane.b32.xlu0 %v159, 96
    %v218 = vpop.permute.xlu0 %217
    %v220 = vsel %vm169, %v159, 0
    %v223 = vsel %vm169, %v218, 0
    %225 = vmatprep.subr.bf16.mxu0 0
    %226 = vmatpush1.bf16.xpose.msra.mxu0 %v223
    %227 = vmatprep.subr.bf16.mxu0 0
    %228 = vmatpush1.bf16.xpose.msra.mxu0 0
    %229 = vmatprep.subr.bf16.mxu0 0
    %230 = vmatpush1.bf16.xpose.msra.mxu0 0
    %231 = vmatprep.subr.bf16.mxu0 0
    %232 = vmatpush1.bf16.xpose.msra.mxu0 0
    %233 = vmatprep.subr.bf16.mxu0 0
    %234 = vmatpush1.bf16.xpose.msra.mxu0 0
    %235 = vmatprep.subr.bf16.mxu0 0
    %236 = vmatpush1.bf16.xpose.msra.mxu0 0
    %237 = vmatprep.subr.bf16.mxu0 0
    %238 = vmatpush1.bf16.xpose.msra.mxu0 0
    %239 = vmatprep.subr.bf16.mxu0 0
    %240 = vmatpush1.bf16.xpose.msra.mxu0 0
    %241 = vmatprep.subr.bf16.mxu0 0
    %242 = vmatpush1.bf16.xpose.msra.mxu0 0
    %243 = vmatprep.subr.bf16.mxu0 0
    %244 = vmatpush1.bf16.xpose.msra.mxu0 0
    %245 = vmatprep.subr.bf16.mxu0 0
    %246 = vmatpush1.bf16.xpose.msra.mxu0 0
    %247 = vmatprep.subr.bf16.mxu0 0
    %248 = vmatpush1.bf16.xpose.msra.mxu0 0
    %249 = vmatprep.subr.bf16.mxu0 0
    %250 = vmatpush1.bf16.xpose.msra.mxu0 0
    %251 = vmatprep.subr.bf16.mxu0 0
    %252 = vmatpush1.bf16.xpose.msra.mxu0 0
    %253 = vmatprep.subr.bf16.mxu0 0
    %254 = vmatpush1.bf16.xpose.msra.mxu0 0
    %255 = vmatprep.subr.bf16.mxu0 0
    %256 = vmatpush1.bf16.xpose.msra.mxu0 0
    %257 = vmatprep.mubr.bf16.mxu0 0
    %258 = vmatmul.mubr.bf16.gmra.mrb[0].mxu0 %v220
    %v259 = vpop.f32.mrb[0].mxu0
    %v260 = vadd.f32 0.0, %v259
    %v261 = vpop.f32.mrb[0].mxu0
    %v262 = vpop.f32.mrb[0].mxu0
    %v263 = vpop.f32.mrb[0].mxu0
    %264 = vdwg.mxu0
    %266 = vrot.lane.b32.xlu0 %v160, 96
    %v267 = vpop.permute.xlu0 %266
    %v269 = vsel %vm169, %v160, 0
    %v272 = vsel %vm169, %v267, 0
    %274 = vmatprep.subr.bf16.mxu0 0
    %275 = vmatpush1.bf16.xpose.msra.mxu0 %v272
    %276 = vmatprep.subr.bf16.mxu0 0
    %277 = vmatpush1.bf16.xpose.msra.mxu0 0
    %278 = vmatprep.subr.bf16.mxu0 0
    %279 = vmatpush1.bf16.xpose.msra.mxu0 0
    %280 = vmatprep.subr.bf16.mxu0 0
    %281 = vmatpush1.bf16.xpose.msra.mxu0 0
    %282 = vmatprep.subr.bf16.mxu0 0
    %283 = vmatpush1.bf16.xpose.msra.mxu0 0
    %284 = vmatprep.subr.bf16.mxu0 0
    %285 = vmatpush1.bf16.xpose.msra.mxu0 0
    %286 = vmatprep.subr.bf16.mxu0 0
    %287 = vmatpush1.bf16.xpose.msra.mxu0 0
    %288 = vmatprep.subr.bf16.mxu0 0
    %289 = vmatpush1.bf16.xpose.msra.mxu0 0
    %290 = vmatprep.subr.bf16.mxu0 0
    %291 = vmatpush1.bf16.xpose.msra.mxu0 0
    %292 = vmatprep.subr.bf16.mxu0 0
    %293 = vmatpush1.bf16.xpose.msra.mxu0 0
    %294 = vmatprep.subr.bf16.mxu0 0
    %295 = vmatpush1.bf16.xpose.msra.mxu0 0
    %296 = vmatprep.subr.bf16.mxu0 0
    %297 = vmatpush1.bf16.xpose.msra.mxu0 0
    %298 = vmatprep.subr.bf16.mxu0 0
    %299 = vmatpush1.bf16.xpose.msra.mxu0 0
    %300 = vmatprep.subr.bf16.mxu0 0
    %301 = vmatpush1.bf16.xpose.msra.mxu0 0
    %302 = vmatprep.subr.bf16.mxu0 0
    %303 = vmatpush1.bf16.xpose.msra.mxu0 0
    %304 = vmatprep.subr.bf16.mxu0 0
    %305 = vmatpush1.bf16.xpose.msra.mxu0 0
    %306 = vmatprep.mubr.bf16.mxu0 0
    %307 = vmatmul.mubr.bf16.gmra.mrb[0].mxu0 %v269
    %v308 = vpop.f32.mrb[0].mxu0
    %v309 = vadd.f32 0.0, %v308
    %v310 = vpop.f32.mrb[0].mxu0
    %v311 = vpop.f32.mrb[0].mxu0
    %v312 = vpop.f32.mrb[0].mxu0
    %313 = vdwg.mxu0
    %315 = vrot.lane.b32.xlu0 %v161, 96
    %v316 = vpop.permute.xlu0 %315
    %v318 = vsel %vm169, %v161, 0
    %v321 = vsel %vm169, %v316, 0
    %323 = vmatprep.subr.bf16.mxu0 0
    %324 = vmatpush1.bf16.xpose.msra.mxu0 %v321
    %325 = vmatprep.subr.bf16.mxu0 0
    %326 = vmatpush1.bf16.xpose.msra.mxu0 0
    %327 = vmatprep.subr.bf16.mxu0 0
    %328 = vmatpush1.bf16.xpose.msra.mxu0 0
    %329 = vmatprep.subr.bf16.mxu0 0
    %330 = vmatpush1.bf16.xpose.msra.mxu0 0
    %331 = vmatprep.subr.bf16.mxu0 0
    %332 = vmatpush1.bf16.xpose.msra.mxu0 0
    %333 = vmatprep.subr.bf16.mxu0 0
    %334 = vmatpush1.bf16.xpose.msra.mxu0 0
    %335 = vmatprep.subr.bf16.mxu0 0
    %336 = vmatpush1.bf16.xpose.msra.mxu0 0
    %337 = vmatprep.subr.bf16.mxu0 0
    %338 = vmatpush1.bf16.xpose.msra.mxu0 0
    %339 = vmatprep.subr.bf16.mxu0 0
    %340 = vmatpush1.bf16.xpose.msra.mxu0 0
    %341 = vmatprep.subr.bf16.mxu0 0
    %342 = vmatpush1.bf16.xpose.msra.mxu0 0
    %343 = vmatprep.subr.bf16.mxu0 0
    %344 = vmatpush1.bf16.xpose.msra.mxu0 0
    %345 = vmatprep.subr.bf16.mxu0 0
    %346 = vmatpush1.bf16.xpose.msra.mxu0 0
    %347 = vmatprep.subr.bf16.mxu0 0
    %348 = vmatpush1.bf16.xpose.msra.mxu0 0
    %349 = vmatprep.subr.bf16.mxu0 0
    %350 = vmatpush1.bf16.xpose.msra.mxu0 0
    %351 = vmatprep.subr.bf16.mxu0 0
    %352 = vmatpush1.bf16.xpose.msra.mxu0 0
    %353 = vmatprep.subr.bf16.mxu0 0
    %354 = vmatpush1.bf16.xpose.msra.mxu0 0
    %355 = vmatprep.mubr.bf16.mxu0 0
    %356 = vmatmul.mubr.bf16.gmra.mrb[0].mxu0 %v318
    %v357 = vpop.f32.mrb[0].mxu0
    %v358 = vadd.f32 0.0, %v357
    %v359 = vpop.f32.mrb[0].mxu0
    %v360 = vpop.f32.mrb[0].mxu0
    %v361 = vpop.f32.mrb[0].mxu0
    %362 = vdwg.mxu0
    %364 = vrot.lane.b32.xlu0 %v162, 96
    %v365 = vpop.permute.xlu0 %364
    %v367 = vsel %vm169, %v162, 0
    %v370 = vsel %vm169, %v365, 0
    %372 = vmatprep.subr.bf16.mxu0 0
    %373 = vmatpush1.bf16.xpose.msra.mxu0 %v370
    %374 = vmatprep.subr.bf16.mxu0 0
    %375 = vmatpush1.bf16.xpose.msra.mxu0 0
    %376 = vmatprep.subr.bf16.mxu0 0
    %377 = vmatpush1.bf16.xpose.msra.mxu0 0
    %378 = vmatprep.subr.bf16.mxu0 0
    %379 = vmatpush1.bf16.xpose.msra.mxu0 0
    %380 = vmatprep.subr.bf16.mxu0 0
    %381 = vmatpush1.bf16.xpose.msra.mxu0 0
    %382 = vmatprep.subr.bf16.mxu0 0
    %383 = vmatpush1.bf16.xpose.msra.mxu0 0
    %384 = vmatprep.subr.bf16.mxu0 0
    %385 = vmatpush1.bf16.xpose.msra.mxu0 0
    %386 = vmatprep.subr.bf16.mxu0 0
    %387 = vmatpush1.bf16.xpose.msra.mxu0 0
    %388 = vmatprep.subr.bf16.mxu0 0
    %389 = vmatpush1.bf16.xpose.msra.mxu0 0
    %390 = vmatprep.subr.bf16.mxu0 0
    %391 = vmatpush1.bf16.xpose.msra.mxu0 0
    %392 = vmatprep.subr.bf16.mxu0 0
    %393 = vmatpush1.bf16.xpose.msra.mxu0 0
    %394 = vmatprep.subr.bf16.mxu0 0
    %395 = vmatpush1.bf16.xpose.msra.mxu0 0
    %396 = vmatprep.subr.bf16.mxu0 0
    %397 = vmatpush1.bf16.xpose.msra.mxu0 0
    %398 = vmatprep.subr.bf16.mxu0 0
    %399 = vmatpush1.bf16.xpose.msra.mxu0 0
    %400 = vmatprep.subr.bf16.mxu0 0
    %401 = vmatpush1.bf16.xpose.msra.mxu0 0
    %402 = vmatprep.subr.bf16.mxu0 0
    %403 = vmatpush1.bf16.xpose.msra.mxu0 0
    %404 = vmatprep.mubr.bf16.mxu0 0
    %405 = vmatmul.mubr.bf16.gmra.mrb[0].mxu0 %v367
    %v406 = vpop.f32.mrb[0].mxu0
    %v407 = vadd.f32 0.0, %v406
    %v408 = vpop.f32.mrb[0].mxu0
    %v409 = vpop.f32.mrb[0].mxu0
    %v410 = vpop.f32.mrb[0].mxu0
    %411 = vdwg.mxu0
    %413 = vrot.lane.b32.xlu0 %v163, 96
    %v414 = vpop.permute.xlu0 %413
    %v416 = vsel %vm169, %v163, 0
    %v419 = vsel %vm169, %v414, 0
    %421 = vmatprep.subr.bf16.mxu0 0
    %422 = vmatpush1.bf16.xpose.msra.mxu0 %v419
    %423 = vmatprep.subr.bf16.mxu0 0
    %424 = vmatpush1.bf16.xpose.msra.mxu0 0
    %425 = vmatprep.subr.bf16.mxu0 0
    %426 = vmatpush1.bf16.xpose.msra.mxu0 0
    %427 = vmatprep.subr.bf16.mxu0 0
    %428 = vmatpush1.bf16.xpose.msra.mxu0 0
    %429 = vmatprep.subr.bf16.mxu0 0
    %430 = vmatpush1.bf16.xpose.msra.mxu0 0
    %431 = vmatprep.subr.bf16.mxu0 0
    %432 = vmatpush1.bf16.xpose.msra.mxu0 0
    %433 = vmatprep.subr.bf16.mxu0 0
    %434 = vmatpush1.bf16.xpose.msra.mxu0 0
    %435 = vmatprep.subr.bf16.mxu0 0
    %436 = vmatpush1.bf16.xpose.msra.mxu0 0
    %437 = vmatprep.subr.bf16.mxu0 0
    %438 = vmatpush1.bf16.xpose.msra.mxu0 0
    %439 = vmatprep.subr.bf16.mxu0 0
    %440 = vmatpush1.bf16.xpose.msra.mxu0 0
    %441 = vmatprep.subr.bf16.mxu0 0
    %442 = vmatpush1.bf16.xpose.msra.mxu0 0
    %443 = vmatprep.subr.bf16.mxu0 0
    %444 = vmatpush1.bf16.xpose.msra.mxu0 0
    %445 = vmatprep.subr.bf16.mxu0 0
    %446 = vmatpush1.bf16.xpose.msra.mxu0 0
    %447 = vmatprep.subr.bf16.mxu0 0
    %448 = vmatpush1.bf16.xpose.msra.mxu0 0
    %449 = vmatprep.subr.bf16.mxu0 0
    %450 = vmatpush1.bf16.xpose.msra.mxu0 0
    %451 = vmatprep.subr.bf16.mxu0 0
    %452 = vmatpush1.bf16.xpose.msra.mxu0 0
    %453 = vmatprep.mubr.bf16.mxu0 0
    %454 = vmatmul.mubr.bf16.gmra.mrb[0].mxu0 %v416
    %v455 = vpop.f32.mrb[0].mxu0
    %v456 = vadd.f32 0.0, %v455
    %v457 = vpop.f32.mrb[0].mxu0
    %v458 = vpop.f32.mrb[0].mxu0
    %v459 = vpop.f32.mrb[0].mxu0
    %460 = vdwg.mxu0
    %462 = vrot.lane.b32.xlu0 %v164, 96
    %v463 = vpop.permute.xlu0 %462
    %v465 = vsel %vm169, %v164, 0
    %v468 = vsel %vm169, %v463, 0
    %470 = vmatprep.subr.bf16.mxu0 0
    %471 = vmatpush1.bf16.xpose.msra.mxu0 %v468
    %472 = vmatprep.subr.bf16.mxu0 0
    %473 = vmatpush1.bf16.xpose.msra.mxu0 0
    %474 = vmatprep.subr.bf16.mxu0 0
    %475 = vmatpush1.bf16.xpose.msra.mxu0 0
    %476 = vmatprep.subr.bf16.mxu0 0
    %477 = vmatpush1.bf16.xpose.msra.mxu0 0
    %478 = vmatprep.subr.bf16.mxu0 0
    %479 = vmatpush1.bf16.xpose.msra.mxu0 0
    %480 = vmatprep.subr.bf16.mxu0 0
    %481 = vmatpush1.bf16.xpose.msra.mxu0 0
    %482 = vmatprep.subr.bf16.mxu0 0
    %483 = vmatpush1.bf16.xpose.msra.mxu0 0
    %484 = vmatprep.subr.bf16.mxu0 0
    %485 = vmatpush1.bf16.xpose.msra.mxu0 0
    %486 = vmatprep.subr.bf16.mxu0 0
    %487 = vmatpush1.bf16.xpose.msra.mxu0 0
    %488 = vmatprep.subr.bf16.mxu0 0
    %489 = vmatpush1.bf16.xpose.msra.mxu0 0
    %490 = vmatprep.subr.bf16.mxu0 0
    %491 = vmatpush1.bf16.xpose.msra.mxu0 0
    %492 = vmatprep.subr.bf16.mxu0 0
    %493 = vmatpush1.bf16.xpose.msra.mxu0 0
    %494 = vmatprep.subr.bf16.mxu0 0
    %495 = vmatpush1.bf16.xpose.msra.mxu0 0
    %496 = vmatprep.subr.bf16.mxu0 0
    %497 = vmatpush1.bf16.xpose.msra.mxu0 0
    %498 = vmatprep.subr.bf16.mxu0 0
    %499 = vmatpush1.bf16.xpose.msra.mxu0 0
    %500 = vmatprep.subr.bf16.mxu0 0
    %501 = vmatpush1.bf16.xpose.msra.mxu0 0
    %502 = vmatprep.mubr.bf16.mxu0 0
    %503 = vmatmul.mubr.bf16.gmra.mrb[0].mxu0 %v465
    %v504 = vpop.f32.mrb[0].mxu0
    %v505 = vadd.f32 0.0, %v504
    %v506 = vpop.f32.mrb[0].mxu0
    %v507 = vpop.f32.mrb[0].mxu0
    %v508 = vpop.f32.mrb[0].mxu0
    %509 = vdwg.mxu0
    %511 = vrot.lane.b32.xlu0 %v165, 96
    %v512 = vpop.permute.xlu0 %511
    %v514 = vsel %vm169, %v165, 0
    %v517 = vsel %vm169, %v512, 0
    %519 = vmatprep.subr.bf16.mxu0 0
    %520 = vmatpush1.bf16.xpose.msra.mxu0 %v517
    %521 = vmatprep.subr.bf16.mxu0 0
    %522 = vmatpush1.bf16.xpose.msra.mxu0 0
    %523 = vmatprep.subr.bf16.mxu0 0
    %524 = vmatpush1.bf16.xpose.msra.mxu0 0
    %525 = vmatprep.subr.bf16.mxu0 0
    %526 = vmatpush1.bf16.xpose.msra.mxu0 0
    %527 = vmatprep.subr.bf16.mxu0 0
    %528 = vmatpush1.bf16.xpose.msra.mxu0 0
    %529 = vmatprep.subr.bf16.mxu0 0
    %530 = vmatpush1.bf16.xpose.msra.mxu0 0
    %531 = vmatprep.subr.bf16.mxu0 0
    %532 = vmatpush1.bf16.xpose.msra.mxu0 0
    %533 = vmatprep.subr.bf16.mxu0 0
    %534 = vmatpush1.bf16.xpose.msra.mxu0 0
    %535 = vmatprep.subr.bf16.mxu0 0
    %536 = vmatpush1.bf16.xpose.msra.mxu0 0
    %537 = vmatprep.subr.bf16.mxu0 0
    %538 = vmatpush1.bf16.xpose.msra.mxu0 0
    %539 = vmatprep.subr.bf16.mxu0 0
    %540 = vmatpush1.bf16.xpose.msra.mxu0 0
    %541 = vmatprep.subr.bf16.mxu0 0
    %542 = vmatpush1.bf16.xpose.msra.mxu0 0
    %543 = vmatprep.subr.bf16.mxu0 0
    %544 = vmatpush1.bf16.xpose.msra.mxu0 0
    %545 = vmatprep.subr.bf16.mxu0 0
    %546 = vmatpush1.bf16.xpose.msra.mxu0 0
    %547 = vmatprep.subr.bf16.mxu0 0
    %548 = vmatpush1.bf16.xpose.msra.mxu0 0
    %549 = vmatprep.subr.bf16.mxu0 0
    %550 = vmatpush1.bf16.xpose.msra.mxu0 0
    %551 = vmatprep.mubr.bf16.mxu0 0
    %552 = vmatmul.mubr.bf16.gmra.mrb[0].mxu0 %v514
    %v553 = vpop.f32.mrb[0].mxu0
    %v554 = vadd.f32 0.0, %v553
    %v555 = vpop.f32.mrb[0].mxu0
    %v556 = vpop.f32.mrb[0].mxu0
    %v557 = vpop.f32.mrb[0].mxu0
    %558 = vdwg.mxu0
    %v559 = vmul.f32 %v211, 0.35355338
    %v560 = vmul.f32 %v260, 0.35355338
    %v561 = vmul.f32 %v309, 0.35355338
    %v562 = vmul.f32 %v358, 0.35355338
    %v563 = vmul.f32 %v407, 0.35355338
    %v564 = vmul.f32 %v456, 0.35355338
    %v565 = vmul.f32 %v505, 0.35355338
    %v566 = vmul.f32 %v554, 0.35355338
    %v567 = vld [vmem:[#allocation2] sm:$0x1]
    %v568 = vld [vmem:[#allocation2 + $0x1] sm:$0x1]
    %v569 = vld [vmem:[#allocation2 + $0x2] sm:$0x1]
    %v570 = vld [vmem:[#allocation2 + $0x3] sm:$0x1]
    %v571 = vld [vmem:[#allocation2 + $0x4] sm:$0x1]
    %v572 = vld [vmem:[#allocation2 + $0x5] sm:$0x1]
    %v573 = vld [vmem:[#allocation2 + $0x6] sm:$0x1]
    %v574 = vld [vmem:[#allocation2 + $0x7] sm:$0x1]
    %v583 = vlaneseq
    %v584 = vshrl.u32 %v583, 7
    %v585 = vsub.s32 0, %v584
    %v586 = vrot.slane %v567, %v585
    %v587 = vlaneseq
    %v588 = vshrl.u32 %v587, 7
    %v589 = vsub.s32 0, %v588
    %v590 = vrot.slane %v568, %v589
    %v591 = vlaneseq
    %v592 = vshrl.u32 %v591, 7
    %v593 = vsub.s32 0, %v592
    %v594 = vrot.slane %v569, %v593
    %v595 = vlaneseq
    %v596 = vshrl.u32 %v595, 7
    %v597 = vsub.s32 0, %v596
    %v598 = vrot.slane %v570, %v597
    %v599 = vlaneseq
    %v600 = vshrl.u32 %v599, 7
    %v601 = vsub.s32 0, %v600
    %v602 = vrot.slane %v571, %v601
    %v603 = vlaneseq
    %v604 = vshrl.u32 %v603, 7
    %v605 = vsub.s32 0, %v604
    %v606 = vrot.slane %v572, %v605
    %v607 = vlaneseq
    %v608 = vshrl.u32 %v607, 7
    %v609 = vsub.s32 0, %v608
    %v610 = vrot.slane %v573, %v609
    %v611 = vlaneseq
    %v612 = vshrl.u32 %v611, 7
    %v613 = vsub.s32 0, %v612
    %v614 = vrot.slane %v574, %v613
    %v623 = vadd.f32 %v559, %v586
    %v624 = vadd.f32 %v560, %v590
    %v625 = vadd.f32 %v561, %v594
    %v626 = vadd.f32 %v562, %v598
    %v627 = vadd.f32 %v563, %v602
    %v628 = vadd.f32 %v564, %v606
    %v629 = vadd.f32 %v565, %v610
    %v630 = vadd.f32 %v566, %v614
    %v631 = vsel %vm169, %v623, -inf
    %632 = vmax.xlane.f32.xlu0 %v631
    %v633 = vpop.xlane.xlu0 %632
    %v634 = vsel %vm169, %v624, -inf
    %635 = vmax.xlane.f32.xlu0 %v634
    %v636 = vpop.xlane.xlu0 %635
    %v637 = vsel %vm169, %v625, -inf
    %638 = vmax.xlane.f32.xlu0 %v637
    %v639 = vpop.xlane.xlu0 %638
    %v640 = vsel %vm169, %v626, -inf
    %641 = vmax.xlane.f32.xlu0 %v640
    %v642 = vpop.xlane.xlu0 %641
    %v643 = vsel %vm169, %v627, -inf
    %644 = vmax.xlane.f32.xlu0 %v643
    %v645 = vpop.xlane.xlu0 %644
    %v646 = vsel %vm169, %v628, -inf
    %647 = vmax.xlane.f32.xlu0 %v646
    %v648 = vpop.xlane.xlu0 %647
    %v649 = vsel %vm169, %v629, -inf
    %650 = vmax.xlane.f32.xlu0 %v649
    %v651 = vpop.xlane.xlu0 %650
    %v652 = vsel %vm169, %v630, -inf
    %653 = vmax.xlane.f32.xlu0 %v652
    %v654 = vpop.xlane.xlu0 %653
    %v655 = vsub.f32 %v623, %v633
    %v656 = vsub.f32 %v624, %v636
    %v657 = vsub.f32 %v625, %v639
    %v658 = vsub.f32 %v626, %v642
    %v659 = vsub.f32 %v627, %v645
    %v660 = vsub.f32 %v628, %v648
    %v661 = vsub.f32 %v629, %v651
    %v662 = vsub.f32 %v630, %v654
    %v663 = vmul.f32 %v655, 1.442695
    %v664 = vpow.pop %v663
    %v665 = vmul.f32 %v656, 1.442695
    %v666 = vpow.pop %v665
    %v667 = vmul.f32 %v657, 1.442695
    %v668 = vpow.pop %v667
    %v669 = vmul.f32 %v658, 1.442695
    %v670 = vpow.pop %v669
    %v671 = vmul.f32 %v659, 1.442695
    %v672 = vpow.pop %v671
    %v673 = vmul.f32 %v660, 1.442695
    %v674 = vpow.pop %v673
    %v675 = vmul.f32 %v661, 1.442695
    %v676 = vpow.pop %v675
    %v677 = vmul.f32 %v662, 1.442695
    %v678 = vpow.pop %v677
    %v679 = vsel %vm169, %v664, 0.0
    %680 = vadd.xlane.f32.xlu0 %v679
    %v681 = vpop.xlane.xlu0 %680
    %v682 = vsel %vm169, %v666, 0.0
    %683 = vadd.xlane.f32.xlu0 %v682
    %v684 = vpop.xlane.xlu0 %683
    %v685 = vsel %vm169, %v668, 0.0
    %686 = vadd.xlane.f32.xlu0 %v685
    %v687 = vpop.xlane.xlu0 %686
    %v688 = vsel %vm169, %v670, 0.0
    %689 = vadd.xlane.f32.xlu0 %v688
    %v690 = vpop.xlane.xlu0 %689
    %v691 = vsel %vm169, %v672, 0.0
    %692 = vadd.xlane.f32.xlu0 %v691
    %v693 = vpop.xlane.xlu0 %692
    %v694 = vsel %vm169, %v674, 0.0
    %695 = vadd.xlane.f32.xlu0 %v694
    %v696 = vpop.xlane.xlu0 %695
    %v697 = vsel %vm169, %v676, 0.0
    %698 = vadd.xlane.f32.xlu0 %v697
    %v699 = vpop.xlane.xlu0 %698
    %v700 = vsel %vm169, %v678, 0.0
    %701 = vadd.xlane.f32.xlu0 %v700
    %v702 = vpop.xlane.xlu0 %701
    %v703 = vrcp.pop %v681
    %v704 = vrcp.pop %v684
    %v705 = vrcp.pop %v687
    %v706 = vrcp.pop %v690
    %v707 = vrcp.pop %v693
    %v708 = vrcp.pop %v696
    %v709 = vrcp.pop %v699
    %v710 = vrcp.pop %v702
    %v711 = vmul.f32 %v664, %v703
    %v712 = vmul.f32 %v666, %v704
    %v713 = vmul.f32 %v668, %v705
    %v714 = vmul.f32 %v670, %v706
    %v715 = vmul.f32 %v672, %v707
    %v716 = vmul.f32 %v674, %v708
    %v717 = vmul.f32 %v676, %v709
    %v718 = vmul.f32 %v678, %v710
    %v719 = vpack.c.bf16 %v711, %v711
    %v720 = vpack.c.bf16 %v712, %v712
    %v721 = vpack.c.bf16 %v713, %v713
    %v722 = vpack.c.bf16 %v714, %v714
    %v723 = vpack.c.bf16 %v715, %v715
    %v724 = vpack.c.bf16 %v716, %v716
    %v725 = vpack.c.bf16 %v717, %v717
    %v726 = vpack.c.bf16 %v718, %v718
    %727 = vrot.lane.b32.xlu0 %v158, 64
    %v728 = vpop.permute.xlu0 %727
    %v730 = vsel %vm169, %v719, 0
    %vm732 = vcmask 1043456
    %v734 = vsel %vm732, %v728, 0
    %736 = vmatprep.subr.bf16.mxu0 0
    %737 = vmatpush1.bf16.msra.mxu0 %v734
    %738 = vmatprep.subr.bf16.mxu0 0
    %739 = vmatpush1.bf16.msra.mxu0 0
    %740 = vmatprep.subr.bf16.mxu0 0
    %741 = vmatpush1.bf16.msra.mxu0 0
    %742 = vmatprep.subr.bf16.mxu0 0
    %743 = vmatpush1.bf16.msra.mxu0 0
    %744 = vmatprep.subr.bf16.mxu0 0
    %745 = vmatpush1.bf16.msra.mxu0 0
    %746 = vmatprep.subr.bf16.mxu0 0
    %747 = vmatpush1.bf16.msra.mxu0 0
    %748 = vmatprep.subr.bf16.mxu0 0
    %749 = vmatpush1.bf16.msra.mxu0 0
    %750 = vmatprep.subr.bf16.mxu0 0
    %751 = vmatpush1.bf16.msra.mxu0 0
    %752 = vmatprep.subr.bf16.mxu0 0
    %753 = vmatpush1.bf16.msra.mxu0 0
    %754 = vmatprep.subr.bf16.mxu0 0
    %755 = vmatpush1.bf16.msra.mxu0 0
    %756 = vmatprep.subr.bf16.mxu0 0
    %757 = vmatpush1.bf16.msra.mxu0 0
    %758 = vmatprep.subr.bf16.mxu0 0
    %759 = vmatpush1.bf16.msra.mxu0 0
    %760 = vmatprep.subr.bf16.mxu0 0
    %761 = vmatpush1.bf16.msra.mxu0 0
    %762 = vmatprep.subr.bf16.mxu0 0
    %763 = vmatpush1.bf16.msra.mxu0 0
    %764 = vmatprep.subr.bf16.mxu0 0
    %765 = vmatpush1.bf16.msra.mxu0 0
    %766 = vmatprep.subr.bf16.mxu0 0
    %767 = vmatpush1.bf16.msra.mxu0 0
    %768 = vmatprep.mubr.bf16.mxu0 0
    %769 = vmatmul.mubr.bf16.gmra.mrb[0].mxu0 %v730
    %v770 = vpop.f32.mrb[0].mxu0
    %v771 = vadd.f32 0.0, %v770
    %v772 = vpop.f32.mrb[0].mxu0
    %v773 = vpop.f32.mrb[0].mxu0
    %v774 = vpop.f32.mrb[0].mxu0
    %775 = vdwg.mxu0
    %776 = vrot.lane.b32.xlu0 %v159, 64
    %v777 = vpop.permute.xlu0 %776
    %v779 = vsel %vm169, %v720, 0
    %v782 = vsel %vm732, %v777, 0
    %784 = vmatprep.subr.bf16.mxu0 0
    %785 = vmatpush1.bf16.msra.mxu0 %v782
    %786 = vmatprep.subr.bf16.mxu0 0
    %787 = vmatpush1.bf16.msra.mxu0 0
    %788 = vmatprep.subr.bf16.mxu0 0
    %789 = vmatpush1.bf16.msra.mxu0 0
    %790 = vmatprep.subr.bf16.mxu0 0
    %791 = vmatpush1.bf16.msra.mxu0 0
    %792 = vmatprep.subr.bf16.mxu0 0
    %793 = vmatpush1.bf16.msra.mxu0 0
    %794 = vmatprep.subr.bf16.mxu0 0
    %795 = vmatpush1.bf16.msra.mxu0 0
    %796 = vmatprep.subr.bf16.mxu0 0
    %797 = vmatpush1.bf16.msra.mxu0 0
    %798 = vmatprep.subr.bf16.mxu0 0
    %799 = vmatpush1.bf16.msra.mxu0 0
    %800 = vmatprep.subr.bf16.mxu0 0
    %801 = vmatpush1.bf16.msra.mxu0 0
    %802 = vmatprep.subr.bf16.mxu0 0
    %803 = vmatpush1.bf16.msra.mxu0 0
    %804 = vmatprep.subr.bf16.mxu0 0
    %805 = vmatpush1.bf16.msra.mxu0 0
    %806 = vmatprep.subr.bf16.mxu0 0
    %807 = vmatpush1.bf16.msra.mxu0 0
    %808 = vmatprep.subr.bf16.mxu0 0
    %809 = vmatpush1.bf16.msra.mxu0 0
    %810 = vmatprep.subr.bf16.mxu0 0
    %811 = vmatpush1.bf16.msra.mxu0 0
    %812 = vmatprep.subr.bf16.mxu0 0
    %813 = vmatpush1.bf16.msra.mxu0 0
    %814 = vmatprep.subr.bf16.mxu0 0
    %815 = vmatpush1.bf16.msra.mxu0 0
    %816 = vmatprep.mubr.bf16.mxu0 0
    %817 = vmatmul.mubr.bf16.gmra.mrb[0].mxu0 %v779
    %v818 = vpop.f32.mrb[0].mxu0
    %v819 = vadd.f32 0.0, %v818
    %v820 = vpop.f32.mrb[0].mxu0
    %v821 = vpop.f32.mrb[0].mxu0
    %v822 = vpop.f32.mrb[0].mxu0
    %823 = vdwg.mxu0
    %824 = vrot.lane.b32.xlu0 %v160, 64
    %v825 = vpop.permute.xlu0 %824
    %v827 = vsel %vm169, %v721, 0
    %v830 = vsel %vm732, %v825, 0
    %832 = vmatprep.subr.bf16.mxu0 0
    %833 = vmatpush1.bf16.msra.mxu0 %v830
    %834 = vmatprep.subr.bf16.mxu0 0
    %835 = vmatpush1.bf16.msra.mxu0 0
    %836 = vmatprep.subr.bf16.mxu0 0
    %837 = vmatpush1.bf16.msra.mxu0 0
    %838 = vmatprep.subr.bf16.mxu0 0
    %839 = vmatpush1.bf16.msra.mxu0 0
    %840 = vmatprep.subr.bf16.mxu0 0
    %841 = vmatpush1.bf16.msra.mxu0 0
    %842 = vmatprep.subr.bf16.mxu0 0
    %843 = vmatpush1.bf16.msra.mxu0 0
    %844 = vmatprep.subr.bf16.mxu0 0
    %845 = vmatpush1.bf16.msra.mxu0 0
    %846 = vmatprep.subr.bf16.mxu0 0
    %847 = vmatpush1.bf16.msra.mxu0 0
    %848 = vmatprep.subr.bf16.mxu0 0
    %849 = vmatpush1.bf16.msra.mxu0 0
    %850 = vmatprep.subr.bf16.mxu0 0
    %851 = vmatpush1.bf16.msra.mxu0 0
    %852 = vmatprep.subr.bf16.mxu0 0
    %853 = vmatpush1.bf16.msra.mxu0 0
    %854 = vmatprep.subr.bf16.mxu0 0
    %855 = vmatpush1.bf16.msra.mxu0 0
    %856 = vmatprep.subr.bf16.mxu0 0
    %857 = vmatpush1.bf16.msra.mxu0 0
    %858 = vmatprep.subr.bf16.mxu0 0
    %859 = vmatpush1.bf16.msra.mxu0 0
    %860 = vmatprep.subr.bf16.mxu0 0
    %861 = vmatpush1.bf16.msra.mxu0 0
    %862 = vmatprep.subr.bf16.mxu0 0
    %863 = vmatpush1.bf16.msra.mxu0 0
    %864 = vmatprep.mubr.bf16.mxu0 0
    %865 = vmatmul.mubr.bf16.gmra.mrb[0].mxu0 %v827
    %v866 = vpop.f32.mrb[0].mxu0
    %v867 = vadd.f32 0.0, %v866
    %v868 = vpop.f32.mrb[0].mxu0
    %v869 = vpop.f32.mrb[0].mxu0
    %v870 = vpop.f32.mrb[0].mxu0
    %871 = vdwg.mxu0
    %872 = vrot.lane.b32.xlu0 %v161, 64
    %v873 = vpop.permute.xlu0 %872
    %v875 = vsel %vm169, %v722, 0
    %v878 = vsel %vm732, %v873, 0
    %880 = vmatprep.subr.bf16.mxu0 0
    %881 = vmatpush1.bf16.msra.mxu0 %v878
    %882 = vmatprep.subr.bf16.mxu0 0
    %883 = vmatpush1.bf16.msra.mxu0 0
    %884 = vmatprep.subr.bf16.mxu0 0
    %885 = vmatpush1.bf16.msra.mxu0 0
    %886 = vmatprep.subr.bf16.mxu0 0
    %887 = vmatpush1.bf16.msra.mxu0 0
    %888 = vmatprep.subr.bf16.mxu0 0
    %889 = vmatpush1.bf16.msra.mxu0 0
    %890 = vmatprep.subr.bf16.mxu0 0
    %891 = vmatpush1.bf16.msra.mxu0 0
    %892 = vmatprep.subr.bf16.mxu0 0
    %893 = vmatpush1.bf16.msra.mxu0 0
    %894 = vmatprep.subr.bf16.mxu0 0
    %895 = vmatpush1.bf16.msra.mxu0 0
    %896 = vmatprep.subr.bf16.mxu0 0
    %897 = vmatpush1.bf16.msra.mxu0 0
    %898 = vmatprep.subr.bf16.mxu0 0
    %899 = vmatpush1.bf16.msra.mxu0 0
    %900 = vmatprep.subr.bf16.mxu0 0
    %901 = vmatpush1.bf16.msra.mxu0 0
    %902 = vmatprep.subr.bf16.mxu0 0
    %903 = vmatpush1.bf16.msra.mxu0 0
    %904 = vmatprep.subr.bf16.mxu0 0
    %905 = vmatpush1.bf16.msra.mxu0 0
    %906 = vmatprep.subr.bf16.mxu0 0
    %907 = vmatpush1.bf16.msra.mxu0 0
    %908 = vmatprep.subr.bf16.mxu0 0
    %909 = vmatpush1.bf16.msra.mxu0 0
    %910 = vmatprep.subr.bf16.mxu0 0
    %911 = vmatpush1.bf16.msra.mxu0 0
    %912 = vmatprep.mubr.bf16.mxu0 0
    %913 = vmatmul.mubr.bf16.gmra.mrb[0].mxu0 %v875
    %v914 = vpop.f32.mrb[0].mxu0
    %v915 = vadd.f32 0.0, %v914
    %v916 = vpop.f32.mrb[0].mxu0
    %v917 = vpop.f32.mrb[0].mxu0
    %v918 = vpop.f32.mrb[0].mxu0
    %919 = vdwg.mxu0
    %920 = vrot.lane.b32.xlu0 %v162, 64
    %v921 = vpop.permute.xlu0 %920
    %v923 = vsel %vm169, %v723, 0
    %v926 = vsel %vm732, %v921, 0
    %928 = vmatprep.subr.bf16.mxu0 0
    %929 = vmatpush1.bf16.msra.mxu0 %v926
    %930 = vmatprep.subr.bf16.mxu0 0
    %931 = vmatpush1.bf16.msra.mxu0 0
    %932 = vmatprep.subr.bf16.mxu0 0
    %933 = vmatpush1.bf16.msra.mxu0 0
    %934 = vmatprep.subr.bf16.mxu0 0
    %935 = vmatpush1.bf16.msra.mxu0 0
    %936 = vmatprep.subr.bf16.mxu0 0
    %937 = vmatpush1.bf16.msra.mxu0 0
    %938 = vmatprep.subr.bf16.mxu0 0
    %939 = vmatpush1.bf16.msra.mxu0 0
    %940 = vmatprep.subr.bf16.mxu0 0
    %941 = vmatpush1.bf16.msra.mxu0 0
    %942 = vmatprep.subr.bf16.mxu0 0
    %943 = vmatpush1.bf16.msra.mxu0 0
    %944 = vmatprep.subr.bf16.mxu0 0
    %945 = vmatpush1.bf16.msra.mxu0 0
    %946 = vmatprep.subr.bf16.mxu0 0
    %947 = vmatpush1.bf16.msra.mxu0 0
    %948 = vmatprep.subr.bf16.mxu0 0
    %949 = vmatpush1.bf16.msra.mxu0 0
    %950 = vmatprep.subr.bf16.mxu0 0
    %951 = vmatpush1.bf16.msra.mxu0 0
    %952 = vmatprep.subr.bf16.mxu0 0
    %953 = vmatpush1.bf16.msra.mxu0 0
    %954 = vmatprep.subr.bf16.mxu0 0
    %955 = vmatpush1.bf16.msra.mxu0 0
    %956 = vmatprep.subr.bf16.mxu0 0
    %957 = vmatpush1.bf16.msra.mxu0 0
    %958 = vmatprep.subr.bf16.mxu0 0
    %959 = vmatpush1.bf16.msra.mxu0 0
    %960 = vmatprep.mubr.bf16.mxu0 0
    %961 = vmatmul.mubr.bf16.gmra.mrb[0].mxu0 %v923
    %v962 = vpop.f32.mrb[0].mxu0
    %v963 = vadd.f32 0.0, %v962
    %v964 = vpop.f32.mrb[0].mxu0
    %v965 = vpop.f32.mrb[0].mxu0
    %v966 = vpop.f32.mrb[0].mxu0
    %967 = vdwg.mxu0
    %968 = vrot.lane.b32.xlu0 %v163, 64
    %v969 = vpop.permute.xlu0 %968
    %v971 = vsel %vm169, %v724, 0
    %v974 = vsel %vm732, %v969, 0
    %976 = vmatprep.subr.bf16.mxu0 0
    %977 = vmatpush1.bf16.msra.mxu0 %v974
    %978 = vmatprep.subr.bf16.mxu0 0
    %979 = vmatpush1.bf16.msra.mxu0 0
    %980 = vmatprep.subr.bf16.mxu0 0
    %981 = vmatpush1.bf16.msra.mxu0 0
    %982 = vmatprep.subr.bf16.mxu0 0
    %983 = vmatpush1.bf16.msra.mxu0 0
    %984 = vmatprep.subr.bf16.mxu0 0
    %985 = vmatpush1.bf16.msra.mxu0 0
    %986 = vmatprep.subr.bf16.mxu0 0
    %987 = vmatpush1.bf16.msra.mxu0 0
    %988 = vmatprep.subr.bf16.mxu0 0
    %989 = vmatpush1.bf16.msra.mxu0 0
    %990 = vmatprep.subr.bf16.mxu0 0
    %991 = vmatpush1.bf16.msra.mxu0 0
    %992 = vmatprep.subr.bf16.mxu0 0
    %993 = vmatpush1.bf16.msra.mxu0 0
    %994 = vmatprep.subr.bf16.mxu0 0
    %995 = vmatpush1.bf16.msra.mxu0 0
    %996 = vmatprep.subr.bf16.mxu0 0
    %997 = vmatpush1.bf16.msra.mxu0 0
    %998 = vmatprep.subr.bf16.mxu0 0
    %999 = vmatpush1.bf16.msra.mxu0 0
    %1000 = vmatprep.subr.bf16.mxu0 0
    %1001 = vmatpush1.bf16.msra.mxu0 0
    %1002 = vmatprep.subr.bf16.mxu0 0
    %1003 = vmatpush1.bf16.msra.mxu0 0
    %1004 = vmatprep.subr.bf16.mxu0 0
    %1005 = vmatpush1.bf16.msra.mxu0 0
    %1006 = vmatprep.subr.bf16.mxu0 0
    %1007 = vmatpush1.bf16.msra.mxu0 0
    %1008 = vmatprep.mubr.bf16.mxu0 0
    %1009 = vmatmul.mubr.bf16.gmra.mrb[0].mxu0 %v971
    %v1010 = vpop.f32.mrb[0].mxu0
    %v1011 = vadd.f32 0.0, %v1010
    %v1012 = vpop.f32.mrb[0].mxu0
    %v1013 = vpop.f32.mrb[0].mxu0
    %v1014 = vpop.f32.mrb[0].mxu0
    %1015 = vdwg.mxu0
    %1016 = vrot.lane.b32.xlu0 %v164, 64
    %v1017 = vpop.permute.xlu0 %1016
    %v1019 = vsel %vm169, %v725, 0
    %v1022 = vsel %vm732, %v1017, 0
    %1024 = vmatprep.subr.bf16.mxu0 0
    %1025 = vmatpush1.bf16.msra.mxu0 %v1022
    %1026 = vmatprep.subr.bf16.mxu0 0
    %1027 = vmatpush1.bf16.msra.mxu0 0
    %1028 = vmatprep.subr.bf16.mxu0 0
    %1029 = vmatpush1.bf16.msra.mxu0 0
    %1030 = vmatprep.subr.bf16.mxu0 0
    %1031 = vmatpush1.bf16.msra.mxu0 0
    %1032 = vmatprep.subr.bf16.mxu0 0
    %1033 = vmatpush1.bf16.msra.mxu0 0
    %1034 = vmatprep.subr.bf16.mxu0 0
    %1035 = vmatpush1.bf16.msra.mxu0 0
    %1036 = vmatprep.subr.bf16.mxu0 0
    %1037 = vmatpush1.bf16.msra.mxu0 0
    %1038 = vmatprep.subr.bf16.mxu0 0
    %1039 = vmatpush1.bf16.msra.mxu0 0
    %1040 = vmatprep.subr.bf16.mxu0 0
    %1041 = vmatpush1.bf16.msra.mxu0 0
    %1042 = vmatprep.subr.bf16.mxu0 0
    %1043 = vmatpush1.bf16.msra.mxu0 0
    %1044 = vmatprep.subr.bf16.mxu0 0
    %1045 = vmatpush1.bf16.msra.mxu0 0
    %1046 = vmatprep.subr.bf16.mxu0 0
    %1047 = vmatpush1.bf16.msra.mxu0 0
    %1048 = vmatprep.subr.bf16.mxu0 0
    %1049 = vmatpush1.bf16.msra.mxu0 0
    %1050 = vmatprep.subr.bf16.mxu0 0
    %1051 = vmatpush1.bf16.msra.mxu0 0
    %1052 = vmatprep.subr.bf16.mxu0 0
    %1053 = vmatpush1.bf16.msra.mxu0 0
    %1054 = vmatprep.subr.bf16.mxu0 0
    %1055 = vmatpush1.bf16.msra.mxu0 0
    %1056 = vmatprep.mubr.bf16.mxu0 0
    %1057 = vmatmul.mubr.bf16.gmra.mrb[0].mxu0 %v1019
    %v1058 = vpop.f32.mrb[0].mxu0
    %v1059 = vadd.f32 0.0, %v1058
    %v1060 = vpop.f32.mrb[0].mxu0
    %v1061 = vpop.f32.mrb[0].mxu0
    %v1062 = vpop.f32.mrb[0].mxu0
    %1063 = vdwg.mxu0
    %1064 = vrot.lane.b32.xlu0 %v165, 64
    %v1065 = vpop.permute.xlu0 %1064
    %v1067 = vsel %vm169, %v726, 0
    %v1070 = vsel %vm732, %v1065, 0
    %1072 = vmatprep.subr.bf16.mxu0 0
    %1073 = vmatpush1.bf16.msra.mxu0 %v1070
    %1074 = vmatprep.subr.bf16.mxu0 0
    %1075 = vmatpush1.bf16.msra.mxu0 0
    %1076 = vmatprep.subr.bf16.mxu0 0
    %1077 = vmatpush1.bf16.msra.mxu0 0
    %1078 = vmatprep.subr.bf16.mxu0 0
    %1079 = vmatpush1.bf16.msra.mxu0 0
    %1080 = vmatprep.subr.bf16.mxu0 0
    %1081 = vmatpush1.bf16.msra.mxu0 0
    %1082 = vmatprep.subr.bf16.mxu0 0
    %1083 = vmatpush1.bf16.msra.mxu0 0
    %1084 = vmatprep.subr.bf16.mxu0 0
    %1085 = vmatpush1.bf16.msra.mxu0 0
    %1086 = vmatprep.subr.bf16.mxu0 0
    %1087 = vmatpush1.bf16.msra.mxu0 0
    %1088 = vmatprep.subr.bf16.mxu0 0
    %1089 = vmatpush1.bf16.msra.mxu0 0
    %1090 = vmatprep.subr.bf16.mxu0 0
    %1091 = vmatpush1.bf16.msra.mxu0 0
    %1092 = vmatprep.subr.bf16.mxu0 0
    %1093 = vmatpush1.bf16.msra.mxu0 0
    %1094 = vmatprep.subr.bf16.mxu0 0
    %1095 = vmatpush1.bf16.msra.mxu0 0
    %1096 = vmatprep.subr.bf16.mxu0 0
    %1097 = vmatpush1.bf16.msra.mxu0 0
    %1098 = vmatprep.subr.bf16.mxu0 0
    %1099 = vmatpush1.bf16.msra.mxu0 0
    %1100 = vmatprep.subr.bf16.mxu0 0
    %1101 = vmatpush1.bf16.msra.mxu0 0
    %1102 = vmatprep.subr.bf16.mxu0 0
    %1103 = vmatpush1.bf16.msra.mxu0 0
    %1104 = vmatprep.mubr.bf16.mxu0 0
    %1105 = vmatmul.mubr.bf16.gmra.mrb[0].mxu0 %v1067
    %v1106 = vpop.f32.mrb[0].mxu0
    %v1107 = vadd.f32 0.0, %v1106
    %v1108 = vpop.f32.mrb[0].mxu0
    %v1109 = vpop.f32.mrb[0].mxu0
    %v1110 = vpop.f32.mrb[0].mxu0
    %1111 = vdwg.mxu0
    %1113 = vrot.lane.b32.xlu0 %v819, 8
    %v1114 = vpop.permute.xlu0 %1113
    %1117 = vrot.lane.b32.xlu0 %v867, 16
    %v1118 = vpop.permute.xlu0 %1117
    %1121 = vrot.lane.b32.xlu0 %v915, 24
    %v1122 = vpop.permute.xlu0 %1121
    %v1124 = vsel %vm169, %v771, %v1114
    %vm1125 = vcmask 130048
    %v1126 = vsel %vm1125, %v1124, %v1118
    %vm1127 = vcmask 195584
    %v1128 = vsel %vm1127, %v1126, %v1122
    %1130 = vrot.lane.b32.xlu0 %v1011, 8
    %v1131 = vpop.permute.xlu0 %1130
    %1134 = vrot.lane.b32.xlu0 %v1059, 16
    %v1135 = vpop.permute.xlu0 %1134
    %1138 = vrot.lane.b32.xlu0 %v1107, 24
    %v1139 = vpop.permute.xlu0 %1138
    %v1141 = vsel %vm169, %v963, %v1131
    %v1142 = vsel %vm1125, %v1141, %v1135
    %v1143 = vsel %vm1127, %v1142, %v1139
    %v1144 = vpack.c.bf16 %v1143, %v1128
    %v1145 = vld [vmem:[%s3] sm:$0xf]
    %v1146 = vld [vmem:[%s3 + $0x4] sm:$0xf]
    %v1147 = vld [vmem:[%s3 + $0x8] sm:$0xf]
    %v1148 = vld [vmem:[%s3 + $0xc] sm:$0xf]
    %v1149 = vld [vmem:[%s4] sm:$0x1]
    %v1151 = vlaneseq
    %v1152 = vshrl.u32 %v1151, 7
    %v1153 = vsub.s32 0, %v1152
    %v1154 = vrot.slane %v1149, %v1153
    %v1160 = vunpack.c.l.b16 %v1145
    %v1161 = vunpack.c.l.b16 %v1146
    %v1162 = vunpack.c.l.b16 %v1147
    %v1163 = vunpack.c.l.b16 %v1148
    %v1164 = vpack.c.b16 %v1161, %v1160
    %v1165 = vpack.c.b16 %v1163, %v1162
    %v1169 = vsel %vm93, %v1144, 0
    %1171 = vmatprep.subr.bf16.mxu0 0
    %1172 = vmatpush1.bf16.msra.mxu0 %v1164
    %1173 = vmatprep.subr.bf16.mxu0 0
    %1174 = vmatpush1.bf16.msra.mxu0 %v1165
    %1175 = vmatprep.subr.bf16.mxu0 0
    %1176 = vmatpush1.bf16.msra.mxu0 0
    %1177 = vmatprep.subr.bf16.mxu0 0
    %1178 = vmatpush1.bf16.msra.mxu0 0
    %1179 = vmatprep.subr.bf16.mxu0 0
    %1180 = vmatpush1.bf16.msra.mxu0 0
    %1181 = vmatprep.subr.bf16.mxu0 0
    %1182 = vmatpush1.bf16.msra.mxu0 0
    %1183 = vmatprep.subr.bf16.mxu0 0
    %1184 = vmatpush1.bf16.msra.mxu0 0
    %1185 = vmatprep.subr.bf16.mxu0 0
    %1186 = vmatpush1.bf16.msra.mxu0 0
    %1187 = vmatprep.subr.bf16.mxu0 0
    %1188 = vmatpush1.bf16.msra.mxu0 0
    %1189 = vmatprep.subr.bf16.mxu0 0
    %1190 = vmatpush1.bf16.msra.mxu0 0
    %1191 = vmatprep.subr.bf16.mxu0 0
    %1192 = vmatpush1.bf16.msra.mxu0 0
    %1193 = vmatprep.subr.bf16.mxu0 0
    %1194 = vmatpush1.bf16.msra.mxu0 0
    %1195 = vmatprep.subr.bf16.mxu0 0
    %1196 = vmatpush1.bf16.msra.mxu0 0
    %1197 = vmatprep.subr.bf16.mxu0 0
    %1198 = vmatpush1.bf16.msra.mxu0 0
    %1199 = vmatprep.subr.bf16.mxu0 0
    %1200 = vmatpush1.bf16.msra.mxu0 0
    %1201 = vmatprep.subr.bf16.mxu0 0
    %1202 = vmatpush1.bf16.msra.mxu0 0
    %1203 = vmatprep.mubr.bf16.mxu0 0
    %1204 = vmatmul.mubr.bf16.gmra.mrb[0].mxu0 %v1169
    %v1205 = vpop.f32.mrb[0].mxu0
    %v1206 = vadd.f32 %v1154, %v1205
    %v1207 = vpop.f32.mrb[0].mxu0
    %v1208 = vpop.f32.mrb[0].mxu0
    %v1209 = vadd.f32 %v1154, %v1208
    %v1210 = vpop.f32.mrb[0].mxu0
    %1211 = vdwg.mxu0
    %v1212 = vadd.f32 %v74, %v1206
    %v1213 = vadd.f32 %v75, %v1209
    %v1214 = vsel %vm93, %v1212, 0.0
    %1215 = vadd.xlane.f32.xlu0 %v1214
    %v1216 = vpop.xlane.xlu0 %1215
    %v1217 = vsel %vm93, %v1213, 0.0
    %1218 = vadd.xlane.f32.xlu0 %v1217
    %v1219 = vpop.xlane.xlu0 %1218
    %v1220 = vrcp.pop 32.0
    %v1221 = vmul.f32 %v1216, %v1220
    %v1222 = vmul.f32 %v1219, %v1220
    %v1223 = vsub.f32 %v1212, %v1221
    %v1224 = vsub.f32 %v1213, %v1222
    %v1225 = vmul.f32 %v1223, %v1223
    %v1226 = vmul.f32 %v1224, %v1224
    %v1227 = vsel %vm93, %v1225, 0.0
    %1228 = vadd.xlane.f32.xlu0 %v1227
    %v1229 = vpop.xlane.xlu0 %1228
    %v1230 = vsel %vm93, %v1226, 0.0
    %1231 = vadd.xlane.f32.xlu0 %v1230
    %v1232 = vpop.xlane.xlu0 %1231
    %v1233 = vmul.f32 %v1229, %v1220
    %v1234 = vmul.f32 %v1232, %v1220
    %v1235 = vadd.f32 %v1233, 1e-05
    %v1236 = vadd.f32 %v1234, 1e-05
    %v1237 = vrsqrt.pop %v1235
    %v1238 = vrsqrt.pop %v1236
    %v1239 = vmul.f32 %v1223, %v1237
    %v1240 = vmul.f32 %v1224, %v1238
    %v1241 = vld [vmem:[%s9] sm:$0x1]
    %v1243 = vlaneseq
    %v1244 = vshrl.u32 %v1243, 7
    %v1245 = vsub.s32 0, %v1244
    %v1246 = vrot.slane %v1241, %v1245
    %v1248 = vmul.f32 %v1239, %v1246
    %v1249 = vmul.f32 %v1240, %v1246
    %v1250 = vld [vmem:[%s10] sm:$0x1]
    %v1252 = vlaneseq
    %v1253 = vshrl.u32 %v1252, 7
    %v1254 = vsub.s32 0, %v1253
    %v1255 = vrot.slane %v1250, %v1254
    %v1257 = vadd.f32 %v1248, %v1255
    %v1258 = vadd.f32 %v1249, %v1255
    %v1259 = vpack.c.bf16 %v1258, %v1257
    %v1260 = vld [vmem:[#allocation5] sm:$0xf]
    %v1261 = vld [vmem:[#allocation5 + $0x4] sm:$0xf]
    %v1262 = vld [vmem:[#allocation5 + $0x8] sm:$0xf]
    %v1263 = vld [vmem:[#allocation5 + $0xc] sm:$0xf]
    %v1264 = vld [vmem:[%s6] sm:$0x1]
    %v1266 = vlaneseq
    %v1267 = vshrl.u32 %v1266, 7
    %v1268 = vsub.s32 0, %v1267
    %v1269 = vrot.slane %v1264, %v1268
    %v1275 = vunpack.c.l.b16 %v1260
    %v1276 = vunpack.c.l.b16 %v1261
    %v1277 = vunpack.c.l.b16 %v1262
    %v1278 = vunpack.c.l.b16 %v1263
    %v1279 = vpack.c.b16 %v1276, %v1275
    %v1280 = vpack.c.b16 %v1278, %v1277
    %v1284 = vsel %vm93, %v1259, 0
    %1286 = vmatprep.subr.bf16.mxu0 0
    %1287 = vmatpush1.bf16.msra.mxu0 %v1279
    %1288 = vmatprep.subr.bf16.mxu0 0
    %1289 = vmatpush1.bf16.msra.mxu0 %v1280
    %1290 = vmatprep.subr.bf16.mxu0 0
    %1291 = vmatpush1.bf16.msra.mxu0 0
    %1292 = vmatprep.subr.bf16.mxu0 0
    %1293 = vmatpush1.bf16.msra.mxu0 0
    %1294 = vmatprep.subr.bf16.mxu0 0
    %1295 = vmatpush1.bf16.msra.mxu0 0
    %1296 = vmatprep.subr.bf16.mxu0 0
    %1297 = vmatpush1.bf16.msra.mxu0 0
    %1298 = vmatprep.subr.bf16.mxu0 0
    %1299 = vmatpush1.bf16.msra.mxu0 0
    %1300 = vmatprep.subr.bf16.mxu0 0
    %1301 = vmatpush1.bf16.msra.mxu0 0
    %1302 = vmatprep.subr.bf16.mxu0 0
    %1303 = vmatpush1.bf16.msra.mxu0 0
    %1304 = vmatprep.subr.bf16.mxu0 0
    %1305 = vmatpush1.bf16.msra.mxu0 0
    %1306 = vmatprep.subr.bf16.mxu0 0
    %1307 = vmatpush1.bf16.msra.mxu0 0
    %1308 = vmatprep.subr.bf16.mxu0 0
    %1309 = vmatpush1.bf16.msra.mxu0 0
    %1310 = vmatprep.subr.bf16.mxu0 0
    %1311 = vmatpush1.bf16.msra.mxu0 0
    %1312 = vmatprep.subr.bf16.mxu0 0
    %1313 = vmatpush1.bf16.msra.mxu0 0
    %1314 = vmatprep.subr.bf16.mxu0 0
    %1315 = vmatpush1.bf16.msra.mxu0 0
    %1316 = vmatprep.subr.bf16.mxu0 0
    %1317 = vmatpush1.bf16.msra.mxu0 0
    %1318 = vmatprep.mubr.bf16.mxu0 0
    %1319 = vmatmul.mubr.bf16.gmra.mrb[0].mxu0 %v1284
    %v1320 = vpop.f32.mrb[0].mxu0
    %v1321 = vadd.f32 %v1269, %v1320
    %v1322 = vpop.f32.mrb[0].mxu0
    %v1323 = vpop.f32.mrb[0].mxu0
    %v1324 = vadd.f32 %v1269, %v1323
    %v1325 = vpop.f32.mrb[0].mxu0
    %1326 = vdwg.mxu0
    %v1327 = vmax.f32 %v1321, 0.0
    %v1328 = vmax.f32 %v1324, 0.0
    %v1329 = vpack.c.bf16 %v1328, %v1327
    %v1330 = vld [vmem:[%s7] sm:$0xf]
    %v1331 = vld [vmem:[%s7 + $0x4] sm:$0xf]
    %v1332 = vld [vmem:[%s7 + $0x8] sm:$0xf]
    %v1333 = vld [vmem:[%s7 + $0xc] sm:$0xf]
    %v1334 = vld [vmem:[%s7 + $0x10] sm:$0xf]
    %v1335 = vld [vmem:[%s7 + $0x14] sm:$0xf]
    %v1336 = vld [vmem:[%s7 + $0x18] sm:$0xf]
    %v1337 = vld [vmem:[%s7 + $0x1c] sm:$0xf]
    %v1338 = vld [vmem:[%s8] sm:$0x1]
    %v1340 = vlaneseq
    %v1341 = vshrl.u32 %v1340, 7
    %v1342 = vsub.s32 0, %v1341
    %v1343 = vrot.slane %v1338, %v1342
    %v1353 = vunpack.c.l.b16 %v1330
    %v1354 = vunpack.c.l.b16 %v1331
    %v1355 = vunpack.c.l.b16 %v1332
    %v1356 = vunpack.c.l.b16 %v1333
    %v1357 = vunpack.c.l.b16 %v1334
    %v1358 = vunpack.c.l.b16 %v1335
    %v1359 = vunpack.c.l.b16 %v1336
    %v1360 = vunpack.c.l.b16 %v1337
    %v1361 = vpack.c.b16 %v1354, %v1353
    %v1362 = vpack.c.b16 %v1356, %v1355
    %v1363 = vpack.c.b16 %v1358, %v1357
    %v1364 = vpack.c.b16 %v1360, %v1359
    %vm1369 = vcmask 523264
    %v1371 = vsel %vm1369, %v1329, 0
    %1373 = vmatprep.subr.bf16.mxu0 0
    %1374 = vmatpush1.bf16.msra.mxu0 %v1361
    %1375 = vmatprep.subr.bf16.mxu0 0
    %1376 = vmatpush1.bf16.msra.mxu0 %v1362
    %1377 = vmatprep.subr.bf16.mxu0 0
    %1378 = vmatpush1.bf16.msra.mxu0 %v1363
    %1379 = vmatprep.subr.bf16.mxu0 0
    %1380 = vmatpush1.bf16.msra.mxu0 %v1364
    %1381 = vmatprep.subr.bf16.mxu0 0
    %1382 = vmatpush1.bf16.msra.mxu0 0
    %1383 = vmatprep.subr.bf16.mxu0 0
    %1384 = vmatpush1.bf16.msra.mxu0 0
    %1385 = vmatprep.subr.bf16.mxu0 0
    %1386 = vmatpush1.bf16.msra.mxu0 0
    %1387 = vmatprep.subr.bf16.mxu0 0
    %1388 = vmatpush1.bf16.msra.mxu0 0
    %1389 = vmatprep.subr.bf16.mxu0 0
    %1390 = vmatpush1.bf16.msra.mxu0 0
    %1391 = vmatprep.subr.bf16.mxu0 0
    %1392 = vmatpush1.bf16.msra.mxu0 0
    %1393 = vmatprep.subr.bf16.mxu0 0
    %1394 = vmatpush1.bf16.msra.mxu0 0
    %1395 = vmatprep.subr.bf16.mxu0 0
    %1396 = vmatpush1.bf16.msra.mxu0 0
    %1397 = vmatprep.subr.bf16.mxu0 0
    %1398 = vmatpush1.bf16.msra.mxu0 0
    %1399 = vmatprep.subr.bf16.mxu0 0
    %1400 = vmatpush1.bf16.msra.mxu0 0
    %1401 = vmatprep.subr.bf16.mxu0 0
    %1402 = vmatpush1.bf16.msra.mxu0 0
    %1403 = vmatprep.subr.bf16.mxu0 0
    %1404 = vmatpush1.bf16.msra.mxu0 0
    %1405 = vmatprep.mubr.bf16.mxu0 0
    %1406 = vmatmul.mubr.bf16.gmra.mrb[0].mxu0 %v1371
    %v1407 = vpop.f32.mrb[0].mxu0
    %v1408 = vadd.f32 %v1343, %v1407
    %v1409 = vpop.f32.mrb[0].mxu0
    %v1410 = vpop.f32.mrb[0].mxu0
    %v1411 = vadd.f32 %v1343, %v1410
    %v1412 = vpop.f32.mrb[0].mxu0
    %1413 = vdwg.mxu0
    %v1414 = vadd.f32 %v1257, %v1408
    %v1415 = vadd.f32 %v1258, %v1411
    %v1416 = vsel %vm93, %v1414, 0.0
    %1417 = vadd.xlane.f32.xlu0 %v1416
    %v1418 = vpop.xlane.xlu0 %1417
    %v1419 = vsel %vm93, %v1415, 0.0
    %1420 = vadd.xlane.f32.xlu0 %v1419
    %v1421 = vpop.xlane.xlu0 %1420
    %v1422 = vmul.f32 %v1418, %v1220
    %v1423 = vmul.f32 %v1421, %v1220
    %v1424 = vsub.f32 %v1414, %v1422
    %v1425 = vsub.f32 %v1415, %v1423
    %v1426 = vmul.f32 %v1424, %v1424
    %v1427 = vmul.f32 %v1425, %v1425
    %v1428 = vsel %vm93, %v1426, 0.0
    %1429 = vadd.xlane.f32.xlu0 %v1428
    %v1430 = vpop.xlane.xlu0 %1429
    %v1431 = vsel %vm93, %v1427, 0.0
    %1432 = vadd.xlane.f32.xlu0 %v1431
    %v1433 = vpop.xlane.xlu0 %1432
    %v1434 = vmul.f32 %v1430, %v1220
    %v1435 = vmul.f32 %v1433, %v1220
    %v1436 = vadd.f32 %v1434, 1e-05
    %v1437 = vadd.f32 %v1435, 1e-05
    %v1438 = vrsqrt.pop %v1436
    %v1439 = vrsqrt.pop %v1437
    %v1440 = vmul.f32 %v1424, %v1438
    %v1441 = vmul.f32 %v1425, %v1439
    %v1442 = vld [vmem:[%s11] sm:$0x1]
    %v1444 = vlaneseq
    %v1445 = vshrl.u32 %v1444, 7
    %v1446 = vsub.s32 0, %v1445
    %v1447 = vrot.slane %v1442, %v1446
    %v1449 = vmul.f32 %v1440, %v1447
    %v1450 = vmul.f32 %v1441, %v1447
    %v1451 = vld [vmem:[%s12] sm:$0x1]
    %v1453 = vlaneseq
    %v1454 = vshrl.u32 %v1453, 7
    %v1455 = vsub.s32 0, %v1454
    %v1456 = vrot.slane %v1451, %v1455
    %v1458 = vadd.f32 %v1449, %v1456
    %v1459 = vadd.f32 %v1450, %v1456
    %1460 = vst.msk [vmem:[#allocation7] sm:$0xff] %vm93, %v1458
    %1461 = vst.msk [vmem:[#allocation7 + $0x8] sm:$0xff] %vm93, %v1459
    // Predicated region
    $region62: #{tpu_custom_call.1} parent=1 // pred_check
      _
    $region63: #{tpu_custom_call.1} parent=1 // pred_check_branch
      %1463 = sbr.rel (0) target = $region65
    $region64: #{tpu_custom_call.1} parent=1 // pred_region
      %s1465 = ssub.s32 256, 256
      %1466 = vsyncadd [#allocation4], %s1465
      %s1467 = sshll.u32 [#allocation7], 4
      %s1468 = int_to_ptr.vmem [resolvable:$true] %s1467
      %1473 = dma.vmem_to_hbm [thread:$0]  %s1468, 256, %s13, [#allocation4], 128, 128, 8
    $region65: #{tpu_custom_call.1} parent=1 // pred_fallthru
      _
    // Predicated region
    $region66: #{tpu_custom_call.1} parent=1 // pred_check
      _
    $region67: #{tpu_custom_call.1} parent=1 // pred_check_branch
      %1475 = sbr.rel (0) target = $region69
    $region68: #{tpu_custom_call.1} parent=1 // pred_region
      %1476 = dma.done [#allocation4], 256
    $region69: #{tpu_custom_call.1} parent=1 // pred_fallthru
      _
    %1477 = vsyncpa [#allocation3], 1
    %1478 = vsyncpa [#allocation6], 1
    %1479 = vsyncpa [#allocation4], 1

</llo_original>
